<compile_context>
chip_gen: v7x
topology: tpu7x:2x2x1
jax: 0.10.0
libtpu: 0.0.40
codegen_flags: <defaults>
</compile_context>

<pallas_src>
import functools

import jax
import jax.numpy as jnp
from jax.experimental import pallas as pl
from jax.experimental.pallas import tpu as pltpu

C_IN = 16
C_MID = 32


def se_kernel(x_ref, w1_ref, b1_ref, w2_ref, b2_ref, o_ref, *, inv_hw):
    # x_ref : (TN, C_IN, HW)   TN batch elements, true (unpadded) spatial extent
    # w1_ref: (C_MID, C_IN)    1x1 conv #1 weight (squeezed from (32,16,1,1))
    # b1_ref: (1, C_MID)
    # w2_ref: (C_IN, C_MID)    1x1 conv #2 weight (squeezed from (16,32,1,1))
    # b2_ref: (1, C_IN)
    # o_ref : (TN, C_IN, HW)

    # AdaptiveAvgPool2d(1): f32-accumulated lane reduce over the true HW lanes.
    pooled = jnp.sum(x_ref[...].astype(jnp.float32), axis=-1) * inv_hw   # (TN, C_IN)

    w1 = w1_ref[...].astype(jnp.float32)                      # (C_MID, C_IN)
    b1 = b1_ref[...].astype(jnp.float32)                      # (1, C_MID)
    w2 = w2_ref[...].astype(jnp.float32)                      # (C_IN, C_MID)
    b2 = b2_ref[...].astype(jnp.float32)                      # (1, C_IN)

    # 1x1 conv #1 (pooled @ w1.T + b1) on the VPU/XLU (tiny; keep it off the MXU).
    h = jnp.sum(pooled[:, None, :] * w1[None, :, :], axis=-1) + b1       # (TN, C_MID)
    h = jnp.maximum(h, 0.0)                                   # ReLU

    # 1x1 conv #2 (h @ w2.T + b2)
    s = jnp.sum(h[:, None, :] * w2[None, :, :], axis=-1) + b2            # (TN, C_IN)

    # Hardsigmoid: relu6(x+3)/6 == clip(x/6 + 0.5, 0, 1)  (matches torch)
    gate = jnp.clip(s * (1.0 / 6.0) + 0.5, 0.0, 1.0)          # (TN, C_IN), f32

    # torch.mul(gate, x): per-(batch,channel) gate broadcast over spatial lanes,
    # computed in the INPUT dtype (no full-block f32 temp; bf16 stays bf16).
    x = x_ref[...]
    o_ref[...] = x * gate.astype(x.dtype)[:, :, None]


def _vmem_limit_bytes():
    """Scoped VMEM limit: 3/4 of physical capacity (96 MiB v5e/v6e, 48 MiB v7x)."""
    try:
        cap = int(pltpu.get_tpu_info().vmem_capacity_bytes)
    except Exception:
        cap = 64 << 20                       # conservative default (v7x per-core)
    if cap < (32 << 20):                     # guard against a bogus query result
        cap = 64 << 20
    return (cap * 3) // 4


def _choose_tn(n, hw, itemsize, vmem_limit):
    """Batch elements per grid step: VMEM-safe, even grid, >=4 steps when possible."""
    hw_vmem = -(-hw // 128) * 128            # lanes the VMEM tile physically occupies
    blk_per_n = C_IN * hw_vmem * itemsize    # one element's input (== output) block
    f32_per_n = C_IN * hw_vmem * 4           # f32 pooling temp
    # 2x in + 2x out pipeline buffers + headroom for compiler-materialized temps.
    per_n = 8 * blk_per_n + f32_per_n
    budget = vmem_limit - (4 << 20)          # margin for weights / small temps
    tn_cap = budget // per_n if per_n > 0 else 0
    if tn_cap < 1:
        # TODO(synk): very large feature maps need an inner spatial split (pooling
        # pass + revisit gating pass); fail loudly instead of mis-tiling.
        raise NotImplementedError(
            f"SEModule Pallas kernel: spatial size H*W={hw} too large for VMEM "
            f"({per_n} bytes/batch element needed, budget {budget} bytes).")
    tn_cap = int(min(tn_cap, n))
    if n == 1:
        return 1
    # Priorities: (1) even grid count (v7x two-TC balance), (2) >=4 grid steps when
    # the batch allows (per-core double buffering), (3) largest TN (fewest steps).
    candidates = []
    for tn in range(1, tn_cap + 1):
        g = -(-n // tn)
        candidates.append(((g % 2 != 0, g < min(4, n), -tn), tn))
    return min(candidates)[1]


def se_module(x_nchw, w1, b1, w2, b2):
    """x_nchw: (N, 16, H, W) float32 or bfloat16. Returns same shape/dtype."""
    N, C, H, W = x_nchw.shape
    assert C == C_IN
    HW = H * W
    itemsize = jnp.dtype(x_nchw.dtype).itemsize

    vmem_limit = _vmem_limit_bytes()
    TN = _choose_tn(N, HW, itemsize, vmem_limit)
    G = -(-N // TN)                          # partial final batch block is fine

    x = x_nchw.reshape(N, C_IN, HW)          # free: merges contiguous trailing dims
    b1_2d = b1.reshape(1, C_MID)
    b2_2d = b2.reshape(1, C_IN)

    kernel = functools.partial(se_kernel, inv_hw=float(1.0 / HW))

    out = pl.pallas_call(
        kernel,
        out_shape=jax.ShapeDtypeStruct((N, C_IN, HW), x.dtype),
        grid_spec=pltpu.PrefetchScalarGridSpec(
            num_scalar_prefetch=0,
            grid=(G,),
            in_specs=[
                # Last block dim == full HW extent (exempt from %128), so no pad.
                pl.BlockSpec((TN, C_IN, HW), lambda n: (n, 0, 0)),    # x slab
                pl.BlockSpec((C_MID, C_IN), lambda n: (0, 0)),        # w1
                pl.BlockSpec((1, C_MID), lambda n: (0, 0)),           # b1
                pl.BlockSpec((C_IN, C_MID), lambda n: (0, 0)),        # w2
                pl.BlockSpec((1, C_IN), lambda n: (0, 0)),            # b2
            ],
            out_specs=pl.BlockSpec((TN, C_IN, HW), lambda n: (n, 0, 0)),
        ),
        compiler_params=pltpu.CompilerParams(
            dimension_semantics=("parallel",),
            vmem_limit_bytes=int(vmem_limit),
        ),
    )(x, w1, b1_2d, w2, b2_2d)

    return out.reshape(N, C_IN, H, W)        # free: splits trailing dim back


def reference(x_nchw, w1, b1, w2, b2):
    """Pure-JAX reference of the PyTorch forward."""
    pooled = jnp.mean(x_nchw.astype(jnp.float32), axis=(2, 3))   # (N, 16)
    h = jnp.maximum(pooled @ w1.T + b1, 0.0)                     # (N, 32)
    s = h @ w2.T + b2                                            # (N, 16)
    gate = jnp.clip(s / 6.0 + 0.5, 0.0, 1.0)                     # hardsigmoid
    return gate[:, :, None, None] * x_nchw.astype(jnp.float32)


if __name__ == "__main__":
    key = jax.random.PRNGKey(0)
    kx, kw1, kb1, kw2, kb2 = jax.random.split(key, 5)

    # Parameters (shapes from nn.Conv2d(16,32,1) / nn.Conv2d(32,16,1)).
    w1 = jax.random.normal(kw1, (C_MID, C_IN), dtype=jnp.float32) * 0.1
    b1 = jax.random.normal(kb1, (C_MID,), dtype=jnp.float32) * 0.1
    w2 = jax.random.normal(kw2, (C_IN, C_MID), dtype=jnp.float32) * 0.1
    b2 = jax.random.normal(kb2, (C_IN,), dtype=jnp.float32) * 0.1

    # Case 1: HW not a multiple of 128 and odd batch (exercises masked tail store
    # and the partial final batch block), no wrapper pad/slice anywhere.
    x1 = jax.random.normal(kx, (3, C_IN, 14, 14), dtype=jnp.float32)
    o1 = jax.block_until_ready(se_module(x1, w1, b1, w2, b2))
    r1 = reference(x1, w1, b1, w2, b2)
    assert o1.shape == x1.shape
    assert jnp.allclose(o1, r1, atol=1e-5, rtol=1e-5), "mismatch vs reference (unaligned case)"

    # Case 2: lane-aligned spatial, f32.
    x2 = jax.random.normal(kx, (2, C_IN, 16, 16), dtype=jnp.float32)
    o2 = jax.block_until_ready(se_module(x2, w1, b1, w2, b2))
    r2 = reference(x2, w1, b1, w2, b2)
    assert jnp.allclose(o2, r2, atol=1e-5, rtol=1e-5), "mismatch vs reference (aligned case)"

    # Case 3: bf16 I/O (half the HBM traffic); gate multiply stays in bf16.
    x3 = x2.astype(jnp.bfloat16)
    o3 = jax.block_until_ready(se_module(x3, w1, b1, w2, b2))
    r3 = reference(x3, w1, b1, w2, b2)
    assert o3.dtype == jnp.bfloat16
    assert jnp.allclose(o3.astype(jnp.float32), r3, atol=5e-2, rtol=5e-2), "mismatch (bf16)"

    print("KERNEL_OK")
</pallas_src>

<mosaic_0001>
module attributes {stable_mosaic.version = 11 : i64} {
  func.func @se_kernel(%arg0: i32, %arg1: memref<2x16x196xf32, #tpu.memory_space<vmem>>, %arg2: memref<32x16xf32, #tpu.memory_space<vmem>>, %arg3: memref<1x32xf32, #tpu.memory_space<vmem>>, %arg4: memref<16x32xf32, #tpu.memory_space<vmem>>, %arg5: memref<1x16xf32, #tpu.memory_space<vmem>>, %arg6: memref<2x16x196xf32, #tpu.memory_space<vmem>>) attributes {dimension_semantics = [#tpu.dimension_semantics<parallel>], iteration_bounds = array<i64: 2>, scalar_prefetch = 0 : i64, scratch_operands = 0 : i64, tpu.core_type = #tpu.core_type<tc>, window_params = [{transform_indices = @transform_0, window_bounds = array<i64: 2, 16, 196>}, {pipeline_mode = #tpu.pipeline_mode<synchronous>, transform_indices = @transform_1, window_bounds = array<i64: 32, 16>}, {pipeline_mode = #tpu.pipeline_mode<synchronous>, transform_indices = @transform_2, window_bounds = array<i64: 1, 32>}, {pipeline_mode = #tpu.pipeline_mode<synchronous>, transform_indices = @transform_3, window_bounds = array<i64: 16, 32>}, {pipeline_mode = #tpu.pipeline_mode<synchronous>, transform_indices = @transform_4, window_bounds = array<i64: 1, 16>}, {transform_indices = @transform_5, window_bounds = array<i64: 2, 16, 196>}]} {
    %c0 = arith.constant 0 : index
    %c0_0 = arith.constant 0 : index
    %c0_1 = arith.constant 0 : index
    %0 = vector.load %arg1[%c0, %c0_0, %c0_1] : memref<2x16x196xf32, #tpu.memory_space<vmem>>, vector<2x16x196xf32>
    %cst = arith.constant dense<0.000000e+00> : vector<2x16xf32>
    %1 = vector.multi_reduction <add>, %0, %cst [2] : vector<2x16x196xf32> to vector<2x16xf32>
    %cst_2 = arith.constant 0.00510204071 : f32
    %2 = vector.broadcast %cst_2 : f32 to vector<2x16xf32>
    %3 = arith.mulf %1, %2 : vector<2x16xf32>
    %c0_3 = arith.constant 0 : index
    %c0_4 = arith.constant 0 : index
    %4 = vector.load %arg2[%c0_3, %c0_4] : memref<32x16xf32, #tpu.memory_space<vmem>>, vector<32x16xf32>
    %c0_5 = arith.constant 0 : index
    %c0_6 = arith.constant 0 : index
    %5 = vector.load %arg3[%c0_5, %c0_6] : memref<1x32xf32, #tpu.memory_space<vmem>>, vector<1x32xf32>
    %c0_7 = arith.constant 0 : index
    %c0_8 = arith.constant 0 : index
    %6 = vector.load %arg4[%c0_7, %c0_8] : memref<16x32xf32, #tpu.memory_space<vmem>>, vector<16x32xf32>
    %c0_9 = arith.constant 0 : index
    %c0_10 = arith.constant 0 : index
    %7 = vector.load %arg5[%c0_9, %c0_10] : memref<1x16xf32, #tpu.memory_space<vmem>>, vector<1x16xf32>
    %8 = vector.shape_cast %3 : vector<2x16xf32> to vector<2x1x16xf32>
    %9 = vector.shape_cast %4 : vector<32x16xf32> to vector<1x32x16xf32>
    %10 = vector.broadcast %8 : vector<2x1x16xf32> to vector<2x32x16xf32>
    %11 = vector.broadcast %9 : vector<1x32x16xf32> to vector<2x32x16xf32>
    %12 = arith.mulf %10, %11 : vector<2x32x16xf32>
    %cst_11 = arith.constant dense<0.000000e+00> : vector<2x32xf32>
    %13 = vector.multi_reduction <add>, %12, %cst_11 [2] : vector<2x32x16xf32> to vector<2x32xf32>
    %14 = vector.broadcast %5 : vector<1x32xf32> to vector<2x32xf32>
    %15 = arith.addf %13, %14 : vector<2x32xf32>
    %cst_12 = arith.constant 0.000000e+00 : f32
    %16 = vector.broadcast %cst_12 : f32 to vector<2x32xf32>
    %17 = arith.maximumf %15, %16 : vector<2x32xf32>
    %18 = vector.shape_cast %17 : vector<2x32xf32> to vector<2x1x32xf32>
    %19 = vector.shape_cast %6 : vector<16x32xf32> to vector<1x16x32xf32>
    %20 = vector.broadcast %18 : vector<2x1x32xf32> to vector<2x16x32xf32>
    %21 = vector.broadcast %19 : vector<1x16x32xf32> to vector<2x16x32xf32>
    %22 = arith.mulf %20, %21 : vector<2x16x32xf32>
    %cst_13 = arith.constant dense<0.000000e+00> : vector<2x16xf32>
    %23 = vector.multi_reduction <add>, %22, %cst_13 [2] : vector<2x16x32xf32> to vector<2x16xf32>
    %24 = vector.broadcast %7 : vector<1x16xf32> to vector<2x16xf32>
    %25 = arith.addf %23, %24 : vector<2x16xf32>
    %cst_14 = arith.constant 0.166666672 : f32
    %26 = vector.broadcast %cst_14 : f32 to vector<2x16xf32>
    %27 = arith.mulf %25, %26 : vector<2x16xf32>
    %cst_15 = arith.constant 5.000000e-01 : f32
    %28 = vector.broadcast %cst_15 : f32 to vector<2x16xf32>
    %29 = arith.addf %27, %28 : vector<2x16xf32>
    %cst_16 = arith.constant 0.000000e+00 : f32
    %cst_17 = arith.constant 1.000000e+00 : f32
    %30 = vector.broadcast %cst_16 : f32 to vector<2x16xf32>
    %31 = arith.maximumf %30, %29 : vector<2x16xf32>
    %32 = vector.broadcast %cst_17 : f32 to vector<2x16xf32>
    %33 = arith.minimumf %32, %31 : vector<2x16xf32>
    %c0_18 = arith.constant 0 : index
    %c0_19 = arith.constant 0 : index
    %c0_20 = arith.constant 0 : index
    %34 = vector.load %arg1[%c0_18, %c0_19, %c0_20] : memref<2x16x196xf32, #tpu.memory_space<vmem>>, vector<2x16x196xf32>
    %35 = vector.shape_cast %33 : vector<2x16xf32> to vector<2x16x1xf32>
    %36 = vector.broadcast %35 : vector<2x16x1xf32> to vector<2x16x196xf32>
    %37 = arith.mulf %34, %36 : vector<2x16x196xf32>
    %c0_21 = arith.constant 0 : index
    %c0_22 = arith.constant 0 : index
    %c0_23 = arith.constant 0 : index
    %38 = vector.load %arg6[%c0_21, %c0_22, %c0_23] : memref<2x16x196xf32, #tpu.memory_space<vmem>>, vector<2x16x196xf32>
    tpu.vector_store %arg6[%c0_21, %c0_22, %c0_23], %37 {strides = array<i32>} : memref<2x16x196xf32, #tpu.memory_space<vmem>>, vector<2x16x196xf32>,
    return
  }
  func.func @transform_0(%arg0: i32) -> (i32, i32, i32) {
    %c0_i32 = arith.constant 0 : i32
    %c0_i32_0 = arith.constant 0 : i32
    %c0_i32_1 = arith.constant 0 : i32
    return %arg0, %c0_i32, %c0_i32_0 : i32, i32, i32
  }
  func.func @transform_1(%arg0: i32) -> (i32, i32) {
    %c0_i32 = arith.constant 0 : i32
    %c0_i32_0 = arith.constant 0 : i32
    %c0_i32_1 = arith.constant 0 : i32
    return %c0_i32, %c0_i32_0 : i32, i32
  }
  func.func @transform_2(%arg0: i32) -> (i32, i32) {
    %c0_i32 = arith.constant 0 : i32
    %c0_i32_0 = arith.constant 0 : i32
    %c0_i32_1 = arith.constant 0 : i32
    return %c0_i32, %c0_i32_0 : i32, i32
  }
  func.func @transform_3(%arg0: i32) -> (i32, i32) {
    %c0_i32 = arith.constant 0 : i32
    %c0_i32_0 = arith.constant 0 : i32
    %c0_i32_1 = arith.constant 0 : i32
    return %c0_i32, %c0_i32_0 : i32, i32
  }
  func.func @transform_4(%arg0: i32) -> (i32, i32) {
    %c0_i32 = arith.constant 0 : i32
    %c0_i32_0 = arith.constant 0 : i32
    %c0_i32_1 = arith.constant 0 : i32
    return %c0_i32, %c0_i32_0 : i32, i32
  }
  func.func @transform_5(%arg0: i32) -> (i32, i32, i32) {
    %c0_i32 = arith.constant 0 : i32
    %c0_i32_0 = arith.constant 0 : i32
    %c0_i32_1 = arith.constant 0 : i32
    return %arg0, %c0_i32, %c0_i32_0 : i32, i32, i32
  }
}

</mosaic_0001>

<llo_original>
// kernel: tpu_custom_call.1
$region0: #{tpu_custom_call.1}
  #allocation0 [shape = 'u32[]', space=smem, size = 0x4, offset = 0x4, fixed_abs, tag = 'smem constant byte address 0x4 - core index']
  #allocation1 [shape = 'u32[144,128]{1,0:T(1,128)}', space=vmem, size = 0x12000, scoped, tag = 'internal scratch']
  %s0 = inlined_call_operand.hbm [shape: f32[3,16,196], index: 0, kind: input, shape index: {}]
  %s1 = inlined_call_operand.vmem [shape: f32[32,16], index: 1, kind: input, shape index: {}]
  %s2 = inlined_call_operand.vmem [shape: f32[1,32], index: 2, kind: input, shape index: {}]
  %s3 = inlined_call_operand.vmem [shape: f32[16,32], index: 3, kind: input, shape index: {}]
  %s4 = inlined_call_operand.vmem [shape: f32[1,16], index: 4, kind: input, shape index: {}]
  %s5 = inlined_call_operand.hbm [shape: f32[3,16,196], index: 5, kind: output, shape index: {}]
  %s6 = sld [smem:[#allocation0]]
  $region57: #{tpu_custom_call.1} parent=0
    _
  %s8 = ssub.s32 1, %s6
  %s9 = scalar_select 0, %s8, %s6
  $region1: #{tpu_custom_call.1} parent=0
    #allocation2 [shape = 'u8[65536]{0}', space=vmem, size = 0x10000, scoped, tag = 'input window, operand 0']
    #allocation3 [shape = 's32[2]{0}', space=sflag, size = 0x8, scoped, tag = 'scoped memory for tpu_custom_call.1']
    #allocation4 [shape = 's32[2]{0}', space=sflag, size = 0x8, scoped, tag = 'scoped memory for tpu_custom_call.1']
    #allocation5 [shape = 'u8[65536]{0}', space=vmem, size = 0x10000, scoped, tag = 'output window, operand 0']
    %10 = vsyncpa [#allocation3], 0
    %s11 = scalar_lea.sflag [#allocation3], 1
    %12 = vsyncpa %s11, 0
    %13 = vsyncpa [#allocation4], 0
    %s14 = scalar_lea.sflag [#allocation4], 1
    %15 = vsyncpa %s14, 0
    loop: start=0, step=1, limit=4
    $region2: #{tpu_custom_call.1} parent=1 // loop_pre_header
      _
    $region3: #{tpu_custom_call.1} parent=1 // loop_header
      %s17 = sphi 0, %s21
      %p18 = scmp.ge.s32.totalorder %s17, 4
      %s27 = sphi 0, %s29
      %s30 = sphi 0, %s27
      %s31 = sphi 0, %s30
      %s47 = sphi 0, %s31
      %s51 = sphi 0, %s51
      %s53 = sphi 0, %s51
      %s54 = sphi 0, %s53
      %s68 = sphi 0, %s54
      %s72 = sphi 0, %s72
      %s74 = sphi 0, %s72
      %s75 = sphi 0, %s74
      %s89 = sphi 0, %s75
      %s93 = sphi 0, %s93
      %s95 = sphi 0, %s93
      %s96 = sphi 0, %s95
      %s110 = sphi 0, %s96
      %s114 = sphi 0, %s114
      %s116 = sphi 0, %s114
      %s117 = sphi 0, %s116
      %s131 = sphi 0, %s117
      %s137 = sphi 0, %s139
      %s140 = sphi 0, %s137
      %s141 = sphi 0, %s140
      %s157 = sphi 0, %s141
    $region4: #{tpu_custom_call.1} parent=1 // loop_header_branch
      %20 = sbr.rel (%p18) target = $region8
    $region5: #{tpu_custom_call.1} parent=1 // loop_body
      %s22 = ssub.s32 %s17, 1
      %s23 = ssub.s32 %s17, 2
      %s24 = sadd.s32 %s17, 1
      %s25 = ssub.s32 %s17, %s24
      %p26 = scmp.eq.s32.totalorder %s25, 0
      %s28 = sadd.s32 %s27, 1
      %s29 = scalar_select %p26, %s27, %s28
      %p32 = pneg %p26
      %p33 = scmp.eq.s32.totalorder %s17, 1
      %p34 = por %p32, %p33
      %p35 = scmp.ne.s32.totalorder %s27, %s30
      %p36 = scmp.eq.s32.totalorder %s17, 0
      %p37 = por %p35, %p36
      %p38 = scmp.ne.s32.totalorder %s27, %s30
      %p39 = scmp.eq.s32.totalorder %s22, 1
      %p40 = por %p38, %p39
      %p41 = scmp.ne.s32.totalorder %s30, %s31
      %p42 = scmp.eq.s32.totalorder %s22, 0
      %p43 = por %p41, %p42
      %p44 = scmp.ne.s32.totalorder %s30, %s31
      %p45 = scmp.eq.s32.totalorder %s23, 1
      %p46 = por %p44, %p45
      %p48 = scmp.ne.s32.totalorder %s31, %s47
      %p49 = scmp.eq.s32.totalorder %s23, 0
      %p50 = por %p48, %p49
      %s52 = sadd.s32 %s51, 1
      %p55 = scmp.eq.s32.totalorder %s17, 1
      %p56 = scmp.ne.s32.totalorder %s51, %s53
      %p57 = scmp.eq.s32.totalorder %s17, 0
      %p58 = por %p56, %p57
      %p59 = scmp.ne.s32.totalorder %s51, %s53
      %p60 = scmp.eq.s32.totalorder %s22, 1
      %p61 = por %p59, %p60
      %p62 = scmp.ne.s32.totalorder %s53, %s54
      %p63 = scmp.eq.s32.totalorder %s22, 0
      %p64 = por %p62, %p63
      %p65 = scmp.ne.s32.totalorder %s53, %s54
      %p66 = scmp.eq.s32.totalorder %s23, 1
      %p67 = por %p65, %p66
      %p69 = scmp.ne.s32.totalorder %s54, %s68
      %p70 = scmp.eq.s32.totalorder %s23, 0
      %p71 = por %p69, %p70
      %s73 = sadd.s32 %s72, 1
      %p76 = scmp.eq.s32.totalorder %s17, 1
      %p77 = scmp.ne.s32.totalorder %s72, %s74
      %p78 = scmp.eq.s32.totalorder %s17, 0
      %p79 = por %p77, %p78
      %p80 = scmp.ne.s32.totalorder %s72, %s74
      %p81 = scmp.eq.s32.totalorder %s22, 1
      %p82 = por %p80, %p81
      %p83 = scmp.ne.s32.totalorder %s74, %s75
      %p84 = scmp.eq.s32.totalorder %s22, 0
      %p85 = por %p83, %p84
      %p86 = scmp.ne.s32.totalorder %s74, %s75
      %p87 = scmp.eq.s32.totalorder %s23, 1
      %p88 = por %p86, %p87
      %p90 = scmp.ne.s32.totalorder %s75, %s89
      %p91 = scmp.eq.s32.totalorder %s23, 0
      %p92 = por %p90, %p91
      %s94 = sadd.s32 %s93, 1
      %p97 = scmp.eq.s32.totalorder %s17, 1
      %p98 = scmp.ne.s32.totalorder %s93, %s95
      %p99 = scmp.eq.s32.totalorder %s17, 0
      %p100 = por %p98, %p99
      %p101 = scmp.ne.s32.totalorder %s93, %s95
      %p102 = scmp.eq.s32.totalorder %s22, 1
      %p103 = por %p101, %p102
      %p104 = scmp.ne.s32.totalorder %s95, %s96
      %p105 = scmp.eq.s32.totalorder %s22, 0
      %p106 = por %p104, %p105
      %p107 = scmp.ne.s32.totalorder %s95, %s96
      %p108 = scmp.eq.s32.totalorder %s23, 1
      %p109 = por %p107, %p108
      %p111 = scmp.ne.s32.totalorder %s96, %s110
      %p112 = scmp.eq.s32.totalorder %s23, 0
      %p113 = por %p111, %p112
      %s115 = sadd.s32 %s114, 1
      %p118 = scmp.eq.s32.totalorder %s17, 1
      %p119 = scmp.ne.s32.totalorder %s114, %s116
      %p120 = scmp.eq.s32.totalorder %s17, 0
      %p121 = por %p119, %p120
      %p122 = scmp.ne.s32.totalorder %s114, %s116
      %p123 = scmp.eq.s32.totalorder %s22, 1
      %p124 = por %p122, %p123
      %p125 = scmp.ne.s32.totalorder %s116, %s117
      %p126 = scmp.eq.s32.totalorder %s22, 0
      %p127 = por %p125, %p126
      %p128 = scmp.ne.s32.totalorder %s116, %s117
      %p129 = scmp.eq.s32.totalorder %s23, 1
      %p130 = por %p128, %p129
      %p132 = scmp.ne.s32.totalorder %s117, %s131
      %p133 = scmp.eq.s32.totalorder %s23, 0
      %p134 = por %p132, %p133
      %s135 = ssub.s32 %s17, %s24
      %p136 = scmp.eq.s32.totalorder %s135, 0
      %s138 = sadd.s32 %s137, 1
      %s139 = scalar_select %p136, %s137, %s138
      %p142 = pneg %p136
      %p143 = scmp.eq.s32.totalorder %s17, 1
      %p144 = por %p142, %p143
      %p145 = scmp.ne.s32.totalorder %s137, %s140
      %p146 = scmp.eq.s32.totalorder %s17, 0
      %p147 = por %p145, %p146
      %p148 = scmp.ne.s32.totalorder %s137, %s140
      %p149 = scmp.eq.s32.totalorder %s22, 1
      %p150 = por %p148, %p149
      %p151 = scmp.ne.s32.totalorder %s140, %s141
      %p152 = scmp.eq.s32.totalorder %s22, 0
      %p153 = por %p151, %p152
      %p154 = scmp.ne.s32.totalorder %s140, %s141
      %p155 = scmp.eq.s32.totalorder %s23, 1
      %p156 = por %p154, %p155
      %p158 = scmp.ne.s32.totalorder %s141, %s157
      %p159 = scmp.eq.s32.totalorder %s23, 0
      %p160 = por %p158, %p159
      %p161 = scmp.le.s32.totalorder 1, %s17
      %p162 = scmp.lt.s32.totalorder %s17, 3
      %p163 = pnand %p161, %p162
      %p164 = pneg %p163
      // Predicated region
      $region9: #{tpu_custom_call.1} parent=5 // pred_check
        _
      $region10: #{tpu_custom_call.1} parent=5 // pred_check_branch
        %166 = sbr.rel (%p163) target = $region12
      $region11: #{tpu_custom_call.1} parent=5 // pred_region
        %s167 = ssub.s32 %s17, 1
        // Predicated region
        $region13: #{tpu_custom_call.1} parent=11 // pred_check
          %p168 = pneg %p64
        $region14: #{tpu_custom_call.1} parent=11 // pred_check_branch
          %170 = sbr.rel (%p168) target = $region16
        $region15: #{tpu_custom_call.1} parent=11 // pred_region
          _
        $region16: #{tpu_custom_call.1} parent=11 // pred_fallthru
          _
        // Predicated region
        $region17: #{tpu_custom_call.1} parent=11 // pred_check
          %p171 = pneg %p85
        $region18: #{tpu_custom_call.1} parent=11 // pred_check_branch
          %173 = sbr.rel (%p171) target = $region20
        $region19: #{tpu_custom_call.1} parent=11 // pred_region
          _
        $region20: #{tpu_custom_call.1} parent=11 // pred_fallthru
          _
        // Predicated region
        $region21: #{tpu_custom_call.1} parent=11 // pred_check
          %p174 = pneg %p106
        $region22: #{tpu_custom_call.1} parent=11 // pred_check_branch
          %176 = sbr.rel (%p174) target = $region24
        $region23: #{tpu_custom_call.1} parent=11 // pred_region
          _
        $region24: #{tpu_custom_call.1} parent=11 // pred_fallthru
          _
        // Predicated region
        $region25: #{tpu_custom_call.1} parent=11 // pred_check
          %p177 = pneg %p127
        $region26: #{tpu_custom_call.1} parent=11 // pred_check_branch
          %179 = sbr.rel (%p177) target = $region28
        $region27: #{tpu_custom_call.1} parent=11 // pred_region
          _
        $region28: #{tpu_custom_call.1} parent=11 // pred_fallthru
          _
      $region12: #{tpu_custom_call.1} parent=5 // pred_fallthru
        _
      %p180 = scmp.lt.s32.totalorder %s17, 2
      // Predicated region
      $region29: #{tpu_custom_call.1} parent=5 // pred_check
        %p181 = pneg %p180
      $region30: #{tpu_custom_call.1} parent=5 // pred_check_branch
        %183 = sbr.rel (%p181) target = $region32
      $region31: #{tpu_custom_call.1} parent=5 // pred_region
        // Predicated region
        $region33: #{tpu_custom_call.1} parent=31 // pred_check
          %p184 = pneg %p37
        $region34: #{tpu_custom_call.1} parent=31 // pred_check_branch
          %186 = sbr.rel (%p184) target = $region36
        $region35: #{tpu_custom_call.1} parent=31 // pred_region
          %s187 = sand.u32 %s27, 1
          %s188 = scalar_lea.sflag [#allocation3], %s187
          %s189 = sand.u32 %s27, 1
          %s190 = smul.addr %s189, 64
          %s191 = scalar_lea.vmem [#allocation2], %s190
          %s192 = smul.u32 2, %s17
          %s193 = ssub.s32 3, %s192
          %p194 = scmp.lt.s32.totalorder %s193, 2
          %s195 = scalar_select %p194, %s193, 2
          %s196 = smul.u32 128, %s195
          %s197 = smul.u32 %s196, 2
          %s198 = smul.u32 %s197, 2
          %s200 = ssub.s32 1024, %s198
          %201 = vsyncadd %s188, %s200
          %p202 = scmp.ne.s32.totalorder 0, %s198
          %s203 = smul.addr %s192, 4
          %s204 = smul.addr %s203, 128
          %s205 = scalar_lea.hbm %s0, %s204
          %s206 = smul.u32 %s195, 2
          %s207 = smul.u32 16, %s206
          %s208 = sshll.u32 %s191, 4
          %s209 = int_to_ptr.vmem [resolvable:$true] %s208
          %s210 = sshll.u32 %s207, 4
          %214 = dma.hbm_to_vmem [thread:$0]  (%p202), %s205, %s210, %s209, %s188, 256, 256, 16
        $region36: #{tpu_custom_call.1} parent=31 // pred_fallthru
          _
      $region32: #{tpu_custom_call.1} parent=5 // pred_fallthru
        _
      %p215 = scmp.le.s32.totalorder 1, %s17
      %p216 = scmp.lt.s32.totalorder %s17, 3
      %p217 = pnand %p215, %p216
      %p218 = pneg %p217
      // Predicated region
      $region37: #{tpu_custom_call.1} parent=5 // pred_check
        _
      $region38: #{tpu_custom_call.1} parent=5 // pred_check_branch
        %220 = sbr.rel (%p217) target = $region40
      $region39: #{tpu_custom_call.1} parent=5 // pred_region
        %s221 = ssub.s32 %s17, 1
        %s222 = sand.u32 %s30, 1
        %s223 = scalar_lea.sflag [#allocation3], %s222
        %s224 = sand.u32 %s30, 1
        %s225 = smul.addr %s224, 64
        %s226 = scalar_lea.vmem [#allocation2], %s225
        // Predicated region
        $region41: #{tpu_custom_call.1} parent=39 // pred_check
          %p227 = pneg %p43
        $region42: #{tpu_custom_call.1} parent=39 // pred_check_branch
          %229 = sbr.rel (%p227) target = $region44
        $region43: #{tpu_custom_call.1} parent=39 // pred_region
          %230 = dma.done %s223, 1024
        $region44: #{tpu_custom_call.1} parent=39 // pred_fallthru
          _
        %s231 = sand.u32 %s30, 1
        %s232 = scalar_lea.sflag [#allocation3], %s231
        %s233 = sand.u32 %s30, 1
        %s234 = smul.addr %s233, 64
        %s235 = scalar_lea.vmem [#allocation2], %s234
        %p236 = pneg %p43
        %p237 = pneg %p40
        %p238 = pneg %p64
        %p239 = pneg %p61
        %p240 = pneg %p85
        %p241 = pneg %p82
        %p242 = pneg %p106
        %p243 = pneg %p103
        %p244 = pneg %p127
        %p245 = pneg %p124
        %p246 = pneg %p153
        %p247 = pneg %p150
        %s248 = sand.u32 %s140, 1
        %s249 = scalar_lea.sflag [#allocation4], %s248
        %s250 = sand.u32 %s140, 1
        %s251 = smul.addr %s250, 64
        %s252 = scalar_lea.vmem [#allocation5], %s251
        %s253 = smul.u32 2, %s22
        %s254 = ssub.s32 3, %s253
        %p255 = scmp.lt.s32.totalorder %s254, 2
        %s256 = scalar_select %p255, %s254, 2
        %s257 = smul.u32 128, %s256
        %s258 = smul.u32 %s257, 2
        %s259 = smul.u32 %s258, 2
        %s260 = smul.u32 2, %s22
        %s261 = ssub.s32 3, %s260
        %p262 = scmp.lt.s32.totalorder %s261, 2
        %s263 = scalar_select %p262, %s261, 2
        %s264 = smul.u32 128, %s263
        %s265 = smul.u32 %s264, 2
        %s266 = smul.u32 %s265, 2
        %v267 = vld [vmem:[%s226] sm:$0xff]
        %v268 = vld [vmem:[%s226 + $0x8] sm:$0xff]
        %v269 = vld [vmem:[%s226 + $0x10] sm:$0xff]
        %v270 = vld [vmem:[%s226 + $0x18] sm:$0xff]
        %v271 = vld [vmem:[%s226 + $0x20] sm:$0xff]
        %v272 = vld [vmem:[%s226 + $0x28] sm:$0xff]
        %v273 = vld [vmem:[%s226 + $0x30] sm:$0xff]
        %v274 = vld [vmem:[%s226 + $0x38] sm:$0xff]
        %vm275 = vcmask 556032
        %v276 = vsel %vm275, %v268, 0.0
        %v277 = vadd.f32 %v267, %v276
        %278 = vadd.xlane.f32.xlu0 %v277
        %v279 = vpop.xlane.xlu0 %278
        %v280 = vsel %vm275, %v270, 0.0
        %v281 = vadd.f32 %v269, %v280
        %282 = vadd.xlane.f32.xlu0 %v281
        %v283 = vpop.xlane.xlu0 %282
        %v284 = vsel %vm275, %v272, 0.0
        %v285 = vadd.f32 %v271, %v284
        %286 = vadd.xlane.f32.xlu0 %v285
        %v287 = vpop.xlane.xlu0 %286
        %v288 = vsel %vm275, %v274, 0.0
        %v289 = vadd.f32 %v273, %v288
        %290 = vadd.xlane.f32.xlu0 %v289
        %v291 = vpop.xlane.xlu0 %290
        %v292 = vmul.f32 %v279, 0.0051020407
        %v293 = vmul.f32 %v283, 0.0051020407
        %v294 = vmul.f32 %v287, 0.0051020407
        %v295 = vmul.f32 %v291, 0.0051020407
        %v296 = vld [vmem:[%s1] sm:$0xff]
        %v297 = vld [vmem:[%s1 + $0x8] sm:$0xff]
        %v298 = vld [vmem:[%s1 + $0x10] sm:$0xff]
        %v299 = vld [vmem:[%s1 + $0x18] sm:$0xff]
        %v300 = vld [vmem:[%s2] sm:$0x1]
        %v301 = vld [vmem:[%s3] sm:$0xff]
        %v302 = vld [vmem:[%s3 + $0x8] sm:$0xff]
        %v303 = vld [vmem:[%s4] sm:$0x1]
        %v308 = vlaneseq
        %v309 = vshrl.u32 %v308, 7
        %v310 = vsub.s32 0, %v309
        %v311 = vrot.slane %v296, %v310
        %313 = vbcast.lane.b32.xlu0 %v311, 256
        %v314 = vpop.permute.xlu0 %313
        %s316 = sor.u32 256, 8
        %317 = vbcast.lane.b32.xlu0 %v311, %s316
        %v318 = vpop.permute.xlu0 %317
        %v319 = vlaneseq
        %v320 = vshrl.u32 %v319, 7
        %v321 = vsub.s32 1, %v320
        %v322 = vrot.slane %v296, %v321
        %324 = vbcast.lane.b32.xlu0 %v322, 256
        %v325 = vpop.permute.xlu0 %324
        %s327 = sor.u32 256, 8
        %328 = vbcast.lane.b32.xlu0 %v322, %s327
        %v329 = vpop.permute.xlu0 %328
        %v330 = vlaneseq
        %v331 = vshrl.u32 %v330, 7
        %v332 = vsub.s32 2, %v331
        %v333 = vrot.slane %v296, %v332
        %335 = vbcast.lane.b32.xlu0 %v333, 256
        %v336 = vpop.permute.xlu0 %335
        %s338 = sor.u32 256, 8
        %339 = vbcast.lane.b32.xlu0 %v333, %s338
        %v340 = vpop.permute.xlu0 %339
        %v341 = vlaneseq
        %v342 = vshrl.u32 %v341, 7
        %v343 = vsub.s32 3, %v342
        %v344 = vrot.slane %v296, %v343
        %346 = vbcast.lane.b32.xlu0 %v344, 256
        %v347 = vpop.permute.xlu0 %346
        %s349 = sor.u32 256, 8
        %350 = vbcast.lane.b32.xlu0 %v344, %s349
        %v351 = vpop.permute.xlu0 %350
        %v352 = vlaneseq
        %v353 = vshrl.u32 %v352, 7
        %v354 = vsub.s32 4, %v353
        %v355 = vrot.slane %v296, %v354
        %357 = vbcast.lane.b32.xlu0 %v355, 256
        %v358 = vpop.permute.xlu0 %357
        %s360 = sor.u32 256, 8
        %361 = vbcast.lane.b32.xlu0 %v355, %s360
        %v362 = vpop.permute.xlu0 %361
        %v363 = vlaneseq
        %v364 = vshrl.u32 %v363, 7
        %v365 = vsub.s32 5, %v364
        %v366 = vrot.slane %v296, %v365
        %368 = vbcast.lane.b32.xlu0 %v366, 256
        %v369 = vpop.permute.xlu0 %368
        %s371 = sor.u32 256, 8
        %372 = vbcast.lane.b32.xlu0 %v366, %s371
        %v373 = vpop.permute.xlu0 %372
        %v374 = vlaneseq
        %v375 = vshrl.u32 %v374, 7
        %v376 = vsub.s32 6, %v375
        %v377 = vrot.slane %v296, %v376
        %379 = vbcast.lane.b32.xlu0 %v377, 256
        %v380 = vpop.permute.xlu0 %379
        %s382 = sor.u32 256, 8
        %383 = vbcast.lane.b32.xlu0 %v377, %s382
        %v384 = vpop.permute.xlu0 %383
        %v385 = vlaneseq
        %v386 = vshrl.u32 %v385, 7
        %v387 = vsub.s32 7, %v386
        %v388 = vrot.slane %v296, %v387
        %390 = vbcast.lane.b32.xlu0 %v388, 256
        %v391 = vpop.permute.xlu0 %390
        %s393 = sor.u32 256, 8
        %394 = vbcast.lane.b32.xlu0 %v388, %s393
        %v395 = vpop.permute.xlu0 %394
        %v396 = vlaneseq
        %v397 = vshrl.u32 %v396, 7
        %v398 = vsub.s32 0, %v397
        %v399 = vrot.slane %v297, %v398
        %401 = vbcast.lane.b32.xlu0 %v399, 256
        %v402 = vpop.permute.xlu0 %401
        %s404 = sor.u32 256, 8
        %405 = vbcast.lane.b32.xlu0 %v399, %s404
        %v406 = vpop.permute.xlu0 %405
        %v407 = vlaneseq
        %v408 = vshrl.u32 %v407, 7
        %v409 = vsub.s32 1, %v408
        %v410 = vrot.slane %v297, %v409
        %412 = vbcast.lane.b32.xlu0 %v410, 256
        %v413 = vpop.permute.xlu0 %412
        %s415 = sor.u32 256, 8
        %416 = vbcast.lane.b32.xlu0 %v410, %s415
        %v417 = vpop.permute.xlu0 %416
        %v418 = vlaneseq
        %v419 = vshrl.u32 %v418, 7
        %v420 = vsub.s32 2, %v419
        %v421 = vrot.slane %v297, %v420
        %423 = vbcast.lane.b32.xlu0 %v421, 256
        %v424 = vpop.permute.xlu0 %423
        %s426 = sor.u32 256, 8
        %427 = vbcast.lane.b32.xlu0 %v421, %s426
        %v428 = vpop.permute.xlu0 %427
        %v429 = vlaneseq
        %v430 = vshrl.u32 %v429, 7
        %v431 = vsub.s32 3, %v430
        %v432 = vrot.slane %v297, %v431
        %434 = vbcast.lane.b32.xlu0 %v432, 256
        %v435 = vpop.permute.xlu0 %434
        %s437 = sor.u32 256, 8
        %438 = vbcast.lane.b32.xlu0 %v432, %s437
        %v439 = vpop.permute.xlu0 %438
        %v440 = vlaneseq
        %v441 = vshrl.u32 %v440, 7
        %v442 = vsub.s32 4, %v441
        %v443 = vrot.slane %v297, %v442
        %445 = vbcast.lane.b32.xlu0 %v443, 256
        %v446 = vpop.permute.xlu0 %445
        %s448 = sor.u32 256, 8
        %449 = vbcast.lane.b32.xlu0 %v443, %s448
        %v450 = vpop.permute.xlu0 %449
        %v451 = vlaneseq
        %v452 = vshrl.u32 %v451, 7
        %v453 = vsub.s32 5, %v452
        %v454 = vrot.slane %v297, %v453
        %456 = vbcast.lane.b32.xlu0 %v454, 256
        %v457 = vpop.permute.xlu0 %456
        %s459 = sor.u32 256, 8
        %460 = vbcast.lane.b32.xlu0 %v454, %s459
        %v461 = vpop.permute.xlu0 %460
        %v462 = vlaneseq
        %v463 = vshrl.u32 %v462, 7
        %v464 = vsub.s32 6, %v463
        %v465 = vrot.slane %v297, %v464
        %467 = vbcast.lane.b32.xlu0 %v465, 256
        %v468 = vpop.permute.xlu0 %467
        %s470 = sor.u32 256, 8
        %471 = vbcast.lane.b32.xlu0 %v465, %s470
        %v472 = vpop.permute.xlu0 %471
        %v473 = vlaneseq
        %v474 = vshrl.u32 %v473, 7
        %v475 = vsub.s32 7, %v474
        %v476 = vrot.slane %v297, %v475
        %478 = vbcast.lane.b32.xlu0 %v476, 256
        %v479 = vpop.permute.xlu0 %478
        %s481 = sor.u32 256, 8
        %482 = vbcast.lane.b32.xlu0 %v476, %s481
        %v483 = vpop.permute.xlu0 %482
        %v484 = vlaneseq
        %v485 = vshrl.u32 %v484, 7
        %v486 = vsub.s32 0, %v485
        %v487 = vrot.slane %v298, %v486
        %489 = vbcast.lane.b32.xlu0 %v487, 256
        %v490 = vpop.permute.xlu0 %489
        %s492 = sor.u32 256, 8
        %493 = vbcast.lane.b32.xlu0 %v487, %s492
        %v494 = vpop.permute.xlu0 %493
        %v495 = vlaneseq
        %v496 = vshrl.u32 %v495, 7
        %v497 = vsub.s32 1, %v496
        %v498 = vrot.slane %v298, %v497
        %500 = vbcast.lane.b32.xlu0 %v498, 256
        %v501 = vpop.permute.xlu0 %500
        %s503 = sor.u32 256, 8
        %504 = vbcast.lane.b32.xlu0 %v498, %s503
        %v505 = vpop.permute.xlu0 %504
        %v506 = vlaneseq
        %v507 = vshrl.u32 %v506, 7
        %v508 = vsub.s32 2, %v507
        %v509 = vrot.slane %v298, %v508
        %511 = vbcast.lane.b32.xlu0 %v509, 256
        %v512 = vpop.permute.xlu0 %511
        %s514 = sor.u32 256, 8
        %515 = vbcast.lane.b32.xlu0 %v509, %s514
        %v516 = vpop.permute.xlu0 %515
        %v517 = vlaneseq
        %v518 = vshrl.u32 %v517, 7
        %v519 = vsub.s32 3, %v518
        %v520 = vrot.slane %v298, %v519
        %522 = vbcast.lane.b32.xlu0 %v520, 256
        %v523 = vpop.permute.xlu0 %522
        %s525 = sor.u32 256, 8
        %526 = vbcast.lane.b32.xlu0 %v520, %s525
        %v527 = vpop.permute.xlu0 %526
        %v528 = vlaneseq
        %v529 = vshrl.u32 %v528, 7
        %v530 = vsub.s32 4, %v529
        %v531 = vrot.slane %v298, %v530
        %533 = vbcast.lane.b32.xlu0 %v531, 256
        %v534 = vpop.permute.xlu0 %533
        %s536 = sor.u32 256, 8
        %537 = vbcast.lane.b32.xlu0 %v531, %s536
        %v538 = vpop.permute.xlu0 %537
        %v539 = vlaneseq
        %v540 = vshrl.u32 %v539, 7
        %v541 = vsub.s32 5, %v540
        %v542 = vrot.slane %v298, %v541
        %544 = vbcast.lane.b32.xlu0 %v542, 256
        %v545 = vpop.permute.xlu0 %544
        %s547 = sor.u32 256, 8
        %548 = vbcast.lane.b32.xlu0 %v542, %s547
        %v549 = vpop.permute.xlu0 %548
        %v550 = vlaneseq
        %v551 = vshrl.u32 %v550, 7
        %v552 = vsub.s32 6, %v551
        %v553 = vrot.slane %v298, %v552
        %555 = vbcast.lane.b32.xlu0 %v553, 256
        %v556 = vpop.permute.xlu0 %555
        %s558 = sor.u32 256, 8
        %559 = vbcast.lane.b32.xlu0 %v553, %s558
        %v560 = vpop.permute.xlu0 %559
        %v561 = vlaneseq
        %v562 = vshrl.u32 %v561, 7
        %v563 = vsub.s32 7, %v562
        %v564 = vrot.slane %v298, %v563
        %566 = vbcast.lane.b32.xlu0 %v564, 256
        %v567 = vpop.permute.xlu0 %566
        %s569 = sor.u32 256, 8
        %570 = vbcast.lane.b32.xlu0 %v564, %s569
        %v571 = vpop.permute.xlu0 %570
        %v572 = vlaneseq
        %v573 = vshrl.u32 %v572, 7
        %v574 = vsub.s32 0, %v573
        %v575 = vrot.slane %v299, %v574
        %577 = vbcast.lane.b32.xlu0 %v575, 256
        %v578 = vpop.permute.xlu0 %577
        %s580 = sor.u32 256, 8
        %581 = vbcast.lane.b32.xlu0 %v575, %s580
        %v582 = vpop.permute.xlu0 %581
        %v583 = vlaneseq
        %v584 = vshrl.u32 %v583, 7
        %v585 = vsub.s32 1, %v584
        %v586 = vrot.slane %v299, %v585
        %588 = vbcast.lane.b32.xlu0 %v586, 256
        %v589 = vpop.permute.xlu0 %588
        %s591 = sor.u32 256, 8
        %592 = vbcast.lane.b32.xlu0 %v586, %s591
        %v593 = vpop.permute.xlu0 %592
        %v594 = vlaneseq
        %v595 = vshrl.u32 %v594, 7
        %v596 = vsub.s32 2, %v595
        %v597 = vrot.slane %v299, %v596
        %599 = vbcast.lane.b32.xlu0 %v597, 256
        %v600 = vpop.permute.xlu0 %599
        %s602 = sor.u32 256, 8
        %603 = vbcast.lane.b32.xlu0 %v597, %s602
        %v604 = vpop.permute.xlu0 %603
        %v605 = vlaneseq
        %v606 = vshrl.u32 %v605, 7
        %v607 = vsub.s32 3, %v606
        %v608 = vrot.slane %v299, %v607
        %610 = vbcast.lane.b32.xlu0 %v608, 256
        %v611 = vpop.permute.xlu0 %610
        %s613 = sor.u32 256, 8
        %614 = vbcast.lane.b32.xlu0 %v608, %s613
        %v615 = vpop.permute.xlu0 %614
        %v616 = vlaneseq
        %v617 = vshrl.u32 %v616, 7
        %v618 = vsub.s32 4, %v617
        %v619 = vrot.slane %v299, %v618
        %621 = vbcast.lane.b32.xlu0 %v619, 256
        %v622 = vpop.permute.xlu0 %621
        %s624 = sor.u32 256, 8
        %625 = vbcast.lane.b32.xlu0 %v619, %s624
        %v626 = vpop.permute.xlu0 %625
        %v627 = vlaneseq
        %v628 = vshrl.u32 %v627, 7
        %v629 = vsub.s32 5, %v628
        %v630 = vrot.slane %v299, %v629
        %632 = vbcast.lane.b32.xlu0 %v630, 256
        %v633 = vpop.permute.xlu0 %632
        %s635 = sor.u32 256, 8
        %636 = vbcast.lane.b32.xlu0 %v630, %s635
        %v637 = vpop.permute.xlu0 %636
        %v638 = vlaneseq
        %v639 = vshrl.u32 %v638, 7
        %v640 = vsub.s32 6, %v639
        %v641 = vrot.slane %v299, %v640
        %643 = vbcast.lane.b32.xlu0 %v641, 256
        %v644 = vpop.permute.xlu0 %643
        %s646 = sor.u32 256, 8
        %647 = vbcast.lane.b32.xlu0 %v641, %s646
        %v648 = vpop.permute.xlu0 %647
        %v649 = vlaneseq
        %v650 = vshrl.u32 %v649, 7
        %v651 = vsub.s32 7, %v650
        %v652 = vrot.slane %v299, %v651
        %654 = vbcast.lane.b32.xlu0 %v652, 256
        %v655 = vpop.permute.xlu0 %654
        %s657 = sor.u32 256, 8
        %658 = vbcast.lane.b32.xlu0 %v652, %s657
        %v659 = vpop.permute.xlu0 %658
        %v724 = vmul.f32 %v292, %v314
        %v725 = vmul.f32 %v293, %v318
        %v726 = vmul.f32 %v292, %v325
        %v727 = vmul.f32 %v293, %v329
        %v728 = vmul.f32 %v292, %v336
        %v729 = vmul.f32 %v293, %v340
        %v730 = vmul.f32 %v292, %v347
        %v731 = vmul.f32 %v293, %v351
        %v732 = vmul.f32 %v292, %v358
        %v733 = vmul.f32 %v293, %v362
        %v734 = vmul.f32 %v292, %v369
        %v735 = vmul.f32 %v293, %v373
        %v736 = vmul.f32 %v292, %v380
        %v737 = vmul.f32 %v293, %v384
        %v738 = vmul.f32 %v292, %v391
        %v739 = vmul.f32 %v293, %v395
        %v740 = vmul.f32 %v292, %v402
        %v741 = vmul.f32 %v293, %v406
        %v742 = vmul.f32 %v292, %v413
        %v743 = vmul.f32 %v293, %v417
        %v744 = vmul.f32 %v292, %v424
        %v745 = vmul.f32 %v293, %v428
        %v746 = vmul.f32 %v292, %v435
        %v747 = vmul.f32 %v293, %v439
        %v748 = vmul.f32 %v292, %v446
        %v749 = vmul.f32 %v293, %v450
        %v750 = vmul.f32 %v292, %v457
        %v751 = vmul.f32 %v293, %v461
        %v752 = vmul.f32 %v292, %v468
        %v753 = vmul.f32 %v293, %v472
        %v754 = vmul.f32 %v292, %v479
        %v755 = vmul.f32 %v293, %v483
        %v756 = vmul.f32 %v292, %v490
        %v757 = vmul.f32 %v293, %v494
        %v758 = vmul.f32 %v292, %v501
        %v759 = vmul.f32 %v293, %v505
        %v760 = vmul.f32 %v292, %v512
        %v761 = vmul.f32 %v293, %v516
        %v762 = vmul.f32 %v292, %v523
        %v763 = vmul.f32 %v293, %v527
        %v764 = vmul.f32 %v292, %v534
        %v765 = vmul.f32 %v293, %v538
        %v766 = vmul.f32 %v292, %v545
        %v767 = vmul.f32 %v293, %v549
        %v768 = vmul.f32 %v292, %v556
        %v769 = vmul.f32 %v293, %v560
        %v770 = vmul.f32 %v292, %v567
        %v771 = vmul.f32 %v293, %v571
        %v772 = vmul.f32 %v292, %v578
        %v773 = vmul.f32 %v293, %v582
        %v774 = vmul.f32 %v292, %v589
        %v775 = vmul.f32 %v293, %v593
        %v776 = vmul.f32 %v292, %v600
        %v777 = vmul.f32 %v293, %v604
        %v778 = vmul.f32 %v292, %v611
        %v779 = vmul.f32 %v293, %v615
        %v780 = vmul.f32 %v292, %v622
        %v781 = vmul.f32 %v293, %v626
        %v782 = vmul.f32 %v292, %v633
        %v783 = vmul.f32 %v293, %v637
        %v784 = vmul.f32 %v292, %v644
        %v785 = vmul.f32 %v293, %v648
        %v786 = vmul.f32 %v292, %v655
        %v787 = vmul.f32 %v293, %v659
        %v788 = vmul.f32 %v294, %v314
        %v789 = vmul.f32 %v295, %v318
        %v790 = vmul.f32 %v294, %v325
        %v791 = vmul.f32 %v295, %v329
        %v792 = vmul.f32 %v294, %v336
        %v793 = vmul.f32 %v295, %v340
        %v794 = vmul.f32 %v294, %v347
        %v795 = vmul.f32 %v295, %v351
        %v796 = vmul.f32 %v294, %v358
        %v797 = vmul.f32 %v295, %v362
        %v798 = vmul.f32 %v294, %v369
        %v799 = vmul.f32 %v295, %v373
        %v800 = vmul.f32 %v294, %v380
        %v801 = vmul.f32 %v295, %v384
        %v802 = vmul.f32 %v294, %v391
        %v803 = vmul.f32 %v295, %v395
        %v804 = vmul.f32 %v294, %v402
        %v805 = vmul.f32 %v295, %v406
        %v806 = vmul.f32 %v294, %v413
        %v807 = vmul.f32 %v295, %v417
        %v808 = vmul.f32 %v294, %v424
        %v809 = vmul.f32 %v295, %v428
        %v810 = vmul.f32 %v294, %v435
        %v811 = vmul.f32 %v295, %v439
        %v812 = vmul.f32 %v294, %v446
        %v813 = vmul.f32 %v295, %v450
        %v814 = vmul.f32 %v294, %v457
        %v815 = vmul.f32 %v295, %v461
        %v816 = vmul.f32 %v294, %v468
        %v817 = vmul.f32 %v295, %v472
        %v818 = vmul.f32 %v294, %v479
        %v819 = vmul.f32 %v295, %v483
        %v820 = vmul.f32 %v294, %v490
        %v821 = vmul.f32 %v295, %v494
        %v822 = vmul.f32 %v294, %v501
        %v823 = vmul.f32 %v295, %v505
        %v824 = vmul.f32 %v294, %v512
        %v825 = vmul.f32 %v295, %v516
        %v826 = vmul.f32 %v294, %v523
        %v827 = vmul.f32 %v295, %v527
        %v828 = vmul.f32 %v294, %v534
        %v829 = vmul.f32 %v295, %v538
        %v830 = vmul.f32 %v294, %v545
        %v831 = vmul.f32 %v295, %v549
        %v832 = vmul.f32 %v294, %v556
        %v833 = vmul.f32 %v295, %v560
        %v834 = vmul.f32 %v294, %v567
        %v835 = vmul.f32 %v295, %v571
        %v836 = vmul.f32 %v294, %v578
        %v837 = vmul.f32 %v295, %v582
        %v838 = vmul.f32 %v294, %v589
        %v839 = vmul.f32 %v295, %v593
        %v840 = vmul.f32 %v294, %v600
        %v841 = vmul.f32 %v295, %v604
        %v842 = vmul.f32 %v294, %v611
        %v843 = vmul.f32 %v295, %v615
        %v844 = vmul.f32 %v294, %v622
        %v845 = vmul.f32 %v295, %v626
        %v846 = vmul.f32 %v294, %v633
        %v847 = vmul.f32 %v295, %v637
        %v848 = vmul.f32 %v294, %v644
        %v849 = vmul.f32 %v295, %v648
        %v850 = vmul.f32 %v294, %v655
        %v851 = vmul.f32 %v295, %v659
        %980 = vset.pattern.permute.xlu0 0
        %981 = vperm.xlu0 %980, %v724
        %v982 = vpop.permute.xlu0 %981
        %983 = vset.pattern.permute.xlu0 0
        %984 = vperm.xlu0 %983, %v725
        %v985 = vpop.permute.xlu0 %984
        %986 = vset.pattern.permute.xlu0 0
        %987 = vperm.xlu0 %986, %v726
        %v988 = vpop.permute.xlu0 %987
        %989 = vset.pattern.permute.xlu0 0
        %990 = vperm.xlu0 %989, %v727
        %v991 = vpop.permute.xlu0 %990
        %992 = vset.pattern.permute.xlu0 0
        %993 = vperm.xlu0 %992, %v728
        %v994 = vpop.permute.xlu0 %993
        %995 = vset.pattern.permute.xlu0 0
        %996 = vperm.xlu0 %995, %v729
        %v997 = vpop.permute.xlu0 %996
        %998 = vset.pattern.permute.xlu0 0
        %999 = vperm.xlu0 %998, %v730
        %v1000 = vpop.permute.xlu0 %999
        %1001 = vset.pattern.permute.xlu0 0
        %1002 = vperm.xlu0 %1001, %v731
        %v1003 = vpop.permute.xlu0 %1002
        %1004 = vset.pattern.permute.xlu0 0
        %1005 = vperm.xlu0 %1004, %v732
        %v1006 = vpop.permute.xlu0 %1005
        %1007 = vset.pattern.permute.xlu0 0
        %1008 = vperm.xlu0 %1007, %v733
        %v1009 = vpop.permute.xlu0 %1008
        %1010 = vset.pattern.permute.xlu0 0
        %1011 = vperm.xlu0 %1010, %v734
        %v1012 = vpop.permute.xlu0 %1011
        %1013 = vset.pattern.permute.xlu0 0
        %1014 = vperm.xlu0 %1013, %v735
        %v1015 = vpop.permute.xlu0 %1014
        %1016 = vset.pattern.permute.xlu0 0
        %1017 = vperm.xlu0 %1016, %v736
        %v1018 = vpop.permute.xlu0 %1017
        %1019 = vset.pattern.permute.xlu0 0
        %1020 = vperm.xlu0 %1019, %v737
        %v1021 = vpop.permute.xlu0 %1020
        %1022 = vset.pattern.permute.xlu0 0
        %1023 = vperm.xlu0 %1022, %v738
        %v1024 = vpop.permute.xlu0 %1023
        %1025 = vset.pattern.permute.xlu0 0
        %1026 = vperm.xlu0 %1025, %v739
        %v1027 = vpop.permute.xlu0 %1026
        %1028 = vset.pattern.permute.xlu0 0
        %1029 = vperm.xlu0 %1028, %v740
        %v1030 = vpop.permute.xlu0 %1029
        %1031 = vset.pattern.permute.xlu0 0
        %1032 = vperm.xlu0 %1031, %v741
        %v1033 = vpop.permute.xlu0 %1032
        %1034 = vset.pattern.permute.xlu0 0
        %1035 = vperm.xlu0 %1034, %v742
        %v1036 = vpop.permute.xlu0 %1035
        %1037 = vset.pattern.permute.xlu0 0
        %1038 = vperm.xlu0 %1037, %v743
        %v1039 = vpop.permute.xlu0 %1038
        %1040 = vset.pattern.permute.xlu0 0
        %1041 = vperm.xlu0 %1040, %v744
        %v1042 = vpop.permute.xlu0 %1041
        %1043 = vset.pattern.permute.xlu0 0
        %1044 = vperm.xlu0 %1043, %v745
        %v1045 = vpop.permute.xlu0 %1044
        %1046 = vset.pattern.permute.xlu0 0
        %1047 = vperm.xlu0 %1046, %v746
        %v1048 = vpop.permute.xlu0 %1047
        %1049 = vset.pattern.permute.xlu0 0
        %1050 = vperm.xlu0 %1049, %v747
        %v1051 = vpop.permute.xlu0 %1050
        %1052 = vset.pattern.permute.xlu0 0
        %1053 = vperm.xlu0 %1052, %v748
        %v1054 = vpop.permute.xlu0 %1053
        %1055 = vset.pattern.permute.xlu0 0
        %1056 = vperm.xlu0 %1055, %v749
        %v1057 = vpop.permute.xlu0 %1056
        %1058 = vset.pattern.permute.xlu0 0
        %1059 = vperm.xlu0 %1058, %v750
        %v1060 = vpop.permute.xlu0 %1059
        %1061 = vset.pattern.permute.xlu0 0
        %1062 = vperm.xlu0 %1061, %v751
        %v1063 = vpop.permute.xlu0 %1062
        %1064 = vset.pattern.permute.xlu0 0
        %1065 = vperm.xlu0 %1064, %v752
        %v1066 = vpop.permute.xlu0 %1065
        %1067 = vset.pattern.permute.xlu0 0
        %1068 = vperm.xlu0 %1067, %v753
        %v1069 = vpop.permute.xlu0 %1068
        %1070 = vset.pattern.permute.xlu0 0
        %1071 = vperm.xlu0 %1070, %v754
        %v1072 = vpop.permute.xlu0 %1071
        %1073 = vset.pattern.permute.xlu0 0
        %1074 = vperm.xlu0 %1073, %v755
        %v1075 = vpop.permute.xlu0 %1074
        %1076 = vset.pattern.permute.xlu0 0
        %1077 = vperm.xlu0 %1076, %v756
        %v1078 = vpop.permute.xlu0 %1077
        %1079 = vset.pattern.permute.xlu0 0
        %1080 = vperm.xlu0 %1079, %v757
        %v1081 = vpop.permute.xlu0 %1080
        %1082 = vset.pattern.permute.xlu0 0
        %1083 = vperm.xlu0 %1082, %v758
        %v1084 = vpop.permute.xlu0 %1083
        %1085 = vset.pattern.permute.xlu0 0
        %1086 = vperm.xlu0 %1085, %v759
        %v1087 = vpop.permute.xlu0 %1086
        %1088 = vset.pattern.permute.xlu0 0
        %1089 = vperm.xlu0 %1088, %v760
        %v1090 = vpop.permute.xlu0 %1089
        %1091 = vset.pattern.permute.xlu0 0
        %1092 = vperm.xlu0 %1091, %v761
        %v1093 = vpop.permute.xlu0 %1092
        %1094 = vset.pattern.permute.xlu0 0
        %1095 = vperm.xlu0 %1094, %v762
        %v1096 = vpop.permute.xlu0 %1095
        %1097 = vset.pattern.permute.xlu0 0
        %1098 = vperm.xlu0 %1097, %v763
        %v1099 = vpop.permute.xlu0 %1098
        %1100 = vset.pattern.permute.xlu0 0
        %1101 = vperm.xlu0 %1100, %v764
        %v1102 = vpop.permute.xlu0 %1101
        %1103 = vset.pattern.permute.xlu0 0
        %1104 = vperm.xlu0 %1103, %v765
        %v1105 = vpop.permute.xlu0 %1104
        %1106 = vset.pattern.permute.xlu0 0
        %1107 = vperm.xlu0 %1106, %v766
        %v1108 = vpop.permute.xlu0 %1107
        %1109 = vset.pattern.permute.xlu0 0
        %1110 = vperm.xlu0 %1109, %v767
        %v1111 = vpop.permute.xlu0 %1110
        %1112 = vset.pattern.permute.xlu0 0
        %1113 = vperm.xlu0 %1112, %v768
        %v1114 = vpop.permute.xlu0 %1113
        %1115 = vset.pattern.permute.xlu0 0
        %1116 = vperm.xlu0 %1115, %v769
        %v1117 = vpop.permute.xlu0 %1116
        %1118 = vset.pattern.permute.xlu0 0
        %1119 = vperm.xlu0 %1118, %v770
        %v1120 = vpop.permute.xlu0 %1119
        %1121 = vset.pattern.permute.xlu0 0
        %1122 = vperm.xlu0 %1121, %v771
        %v1123 = vpop.permute.xlu0 %1122
        %1124 = vset.pattern.permute.xlu0 0
        %1125 = vperm.xlu0 %1124, %v772
        %v1126 = vpop.permute.xlu0 %1125
        %1127 = vset.pattern.permute.xlu0 0
        %1128 = vperm.xlu0 %1127, %v773
        %v1129 = vpop.permute.xlu0 %1128
        %1130 = vset.pattern.permute.xlu0 0
        %1131 = vperm.xlu0 %1130, %v774
        %v1132 = vpop.permute.xlu0 %1131
        %1133 = vset.pattern.permute.xlu0 0
        %1134 = vperm.xlu0 %1133, %v775
        %v1135 = vpop.permute.xlu0 %1134
        %1136 = vset.pattern.permute.xlu0 0
        %1137 = vperm.xlu0 %1136, %v776
        %v1138 = vpop.permute.xlu0 %1137
        %1139 = vset.pattern.permute.xlu0 0
        %1140 = vperm.xlu0 %1139, %v777
        %v1141 = vpop.permute.xlu0 %1140
        %1142 = vset.pattern.permute.xlu0 0
        %1143 = vperm.xlu0 %1142, %v778
        %v1144 = vpop.permute.xlu0 %1143
        %1145 = vset.pattern.permute.xlu0 0
        %1146 = vperm.xlu0 %1145, %v779
        %v1147 = vpop.permute.xlu0 %1146
        %1148 = vset.pattern.permute.xlu0 0
        %1149 = vperm.xlu0 %1148, %v780
        %v1150 = vpop.permute.xlu0 %1149
        %1151 = vset.pattern.permute.xlu0 0
        %1152 = vperm.xlu0 %1151, %v781
        %v1153 = vpop.permute.xlu0 %1152
        %1154 = vset.pattern.permute.xlu0 0
        %1155 = vperm.xlu0 %1154, %v782
        %v1156 = vpop.permute.xlu0 %1155
        %1157 = vset.pattern.permute.xlu0 0
        %1158 = vperm.xlu0 %1157, %v783
        %v1159 = vpop.permute.xlu0 %1158
        %1160 = vset.pattern.permute.xlu0 0
        %1161 = vperm.xlu0 %1160, %v784
        %v1162 = vpop.permute.xlu0 %1161
        %1163 = vset.pattern.permute.xlu0 0
        %1164 = vperm.xlu0 %1163, %v785
        %v1165 = vpop.permute.xlu0 %1164
        %1166 = vset.pattern.permute.xlu0 0
        %1167 = vperm.xlu0 %1166, %v786
        %v1168 = vpop.permute.xlu0 %1167
        %1169 = vset.pattern.permute.xlu0 0
        %1170 = vperm.xlu0 %1169, %v787
        %v1171 = vpop.permute.xlu0 %1170
        %1172 = vset.pattern.permute.xlu0 0
        %1173 = vperm.xlu0 %1172, %v788
        %v1174 = vpop.permute.xlu0 %1173
        %1175 = vset.pattern.permute.xlu0 0
        %1176 = vperm.xlu0 %1175, %v789
        %v1177 = vpop.permute.xlu0 %1176
        %1178 = vset.pattern.permute.xlu0 0
        %1179 = vperm.xlu0 %1178, %v790
        %v1180 = vpop.permute.xlu0 %1179
        %1181 = vset.pattern.permute.xlu0 0
        %1182 = vperm.xlu0 %1181, %v791
        %v1183 = vpop.permute.xlu0 %1182
        %1184 = vset.pattern.permute.xlu0 0
        %1185 = vperm.xlu0 %1184, %v792
        %v1186 = vpop.permute.xlu0 %1185
        %1187 = vset.pattern.permute.xlu0 0
        %1188 = vperm.xlu0 %1187, %v793
        %v1189 = vpop.permute.xlu0 %1188
        %1190 = vset.pattern.permute.xlu0 0
        %1191 = vperm.xlu0 %1190, %v794
        %v1192 = vpop.permute.xlu0 %1191
        %1193 = vset.pattern.permute.xlu0 0
        %1194 = vperm.xlu0 %1193, %v795
        %v1195 = vpop.permute.xlu0 %1194
        %1196 = vset.pattern.permute.xlu0 0
        %1197 = vperm.xlu0 %1196, %v796
        %v1198 = vpop.permute.xlu0 %1197
        %1199 = vset.pattern.permute.xlu0 0
        %1200 = vperm.xlu0 %1199, %v797
        %v1201 = vpop.permute.xlu0 %1200
        %1202 = vset.pattern.permute.xlu0 0
        %1203 = vperm.xlu0 %1202, %v798
        %v1204 = vpop.permute.xlu0 %1203
        %1205 = vset.pattern.permute.xlu0 0
        %1206 = vperm.xlu0 %1205, %v799
        %v1207 = vpop.permute.xlu0 %1206
        %1208 = vset.pattern.permute.xlu0 0
        %1209 = vperm.xlu0 %1208, %v800
        %v1210 = vpop.permute.xlu0 %1209
        %1211 = vset.pattern.permute.xlu0 0
        %1212 = vperm.xlu0 %1211, %v801
        %v1213 = vpop.permute.xlu0 %1212
        %1214 = vset.pattern.permute.xlu0 0
        %1215 = vperm.xlu0 %1214, %v802
        %v1216 = vpop.permute.xlu0 %1215
        %1217 = vset.pattern.permute.xlu0 0
        %1218 = vperm.xlu0 %1217, %v803
        %v1219 = vpop.permute.xlu0 %1218
        %1220 = vset.pattern.permute.xlu0 0
        %1221 = vperm.xlu0 %1220, %v804
        %v1222 = vpop.permute.xlu0 %1221
        %1223 = vset.pattern.permute.xlu0 0
        %1224 = vperm.xlu0 %1223, %v805
        %v1225 = vpop.permute.xlu0 %1224
        %1226 = vset.pattern.permute.xlu0 0
        %1227 = vperm.xlu0 %1226, %v806
        %v1228 = vpop.permute.xlu0 %1227
        %1229 = vset.pattern.permute.xlu0 0
        %1230 = vperm.xlu0 %1229, %v807
        %v1231 = vpop.permute.xlu0 %1230
        %1232 = vset.pattern.permute.xlu0 0
        %1233 = vperm.xlu0 %1232, %v808
        %v1234 = vpop.permute.xlu0 %1233
        %1235 = vset.pattern.permute.xlu0 0
        %1236 = vperm.xlu0 %1235, %v809
        %v1237 = vpop.permute.xlu0 %1236
        %1238 = vset.pattern.permute.xlu0 0
        %1239 = vperm.xlu0 %1238, %v810
        %v1240 = vpop.permute.xlu0 %1239
        %1241 = vset.pattern.permute.xlu0 0
        %1242 = vperm.xlu0 %1241, %v811
        %v1243 = vpop.permute.xlu0 %1242
        %1244 = vset.pattern.permute.xlu0 0
        %1245 = vperm.xlu0 %1244, %v812
        %v1246 = vpop.permute.xlu0 %1245
        %1247 = vset.pattern.permute.xlu0 0
        %1248 = vperm.xlu0 %1247, %v813
        %v1249 = vpop.permute.xlu0 %1248
        %1250 = vset.pattern.permute.xlu0 0
        %1251 = vperm.xlu0 %1250, %v814
        %v1252 = vpop.permute.xlu0 %1251
        %1253 = vset.pattern.permute.xlu0 0
        %1254 = vperm.xlu0 %1253, %v815
        %v1255 = vpop.permute.xlu0 %1254
        %1256 = vset.pattern.permute.xlu0 0
        %1257 = vperm.xlu0 %1256, %v816
        %v1258 = vpop.permute.xlu0 %1257
        %1259 = vset.pattern.permute.xlu0 0
        %1260 = vperm.xlu0 %1259, %v817
        %v1261 = vpop.permute.xlu0 %1260
        %1262 = vset.pattern.permute.xlu0 0
        %1263 = vperm.xlu0 %1262, %v818
        %v1264 = vpop.permute.xlu0 %1263
        %1265 = vset.pattern.permute.xlu0 0
        %1266 = vperm.xlu0 %1265, %v819
        %v1267 = vpop.permute.xlu0 %1266
        %1268 = vset.pattern.permute.xlu0 0
        %1269 = vperm.xlu0 %1268, %v820
        %v1270 = vpop.permute.xlu0 %1269
        %1271 = vset.pattern.permute.xlu0 0
        %1272 = vperm.xlu0 %1271, %v821
        %v1273 = vpop.permute.xlu0 %1272
        %1274 = vset.pattern.permute.xlu0 0
        %1275 = vperm.xlu0 %1274, %v822
        %v1276 = vpop.permute.xlu0 %1275
        %1277 = vset.pattern.permute.xlu0 0
        %1278 = vperm.xlu0 %1277, %v823
        %v1279 = vpop.permute.xlu0 %1278
        %1280 = vset.pattern.permute.xlu0 0
        %1281 = vperm.xlu0 %1280, %v824
        %v1282 = vpop.permute.xlu0 %1281
        %1283 = vset.pattern.permute.xlu0 0
        %1284 = vperm.xlu0 %1283, %v825
        %v1285 = vpop.permute.xlu0 %1284
        %1286 = vset.pattern.permute.xlu0 0
        %1287 = vperm.xlu0 %1286, %v826
        %v1288 = vpop.permute.xlu0 %1287
        %1289 = vset.pattern.permute.xlu0 0
        %1290 = vperm.xlu0 %1289, %v827
        %v1291 = vpop.permute.xlu0 %1290
        %1292 = vset.pattern.permute.xlu0 0
        %1293 = vperm.xlu0 %1292, %v828
        %v1294 = vpop.permute.xlu0 %1293
        %1295 = vset.pattern.permute.xlu0 0
        %1296 = vperm.xlu0 %1295, %v829
        %v1297 = vpop.permute.xlu0 %1296
        %1298 = vset.pattern.permute.xlu0 0
        %1299 = vperm.xlu0 %1298, %v830
        %v1300 = vpop.permute.xlu0 %1299
        %1301 = vset.pattern.permute.xlu0 0
        %1302 = vperm.xlu0 %1301, %v831
        %v1303 = vpop.permute.xlu0 %1302
        %1304 = vset.pattern.permute.xlu0 0
        %1305 = vperm.xlu0 %1304, %v832
        %v1306 = vpop.permute.xlu0 %1305
        %1307 = vset.pattern.permute.xlu0 0
        %1308 = vperm.xlu0 %1307, %v833
        %v1309 = vpop.permute.xlu0 %1308
        %1310 = vset.pattern.permute.xlu0 0
        %1311 = vperm.xlu0 %1310, %v834
        %v1312 = vpop.permute.xlu0 %1311
        %1313 = vset.pattern.permute.xlu0 0
        %1314 = vperm.xlu0 %1313, %v835
        %v1315 = vpop.permute.xlu0 %1314
        %1316 = vset.pattern.permute.xlu0 0
        %1317 = vperm.xlu0 %1316, %v836
        %v1318 = vpop.permute.xlu0 %1317
        %1319 = vset.pattern.permute.xlu0 0
        %1320 = vperm.xlu0 %1319, %v837
        %v1321 = vpop.permute.xlu0 %1320
        %1322 = vset.pattern.permute.xlu0 0
        %1323 = vperm.xlu0 %1322, %v838
        %v1324 = vpop.permute.xlu0 %1323
        %1325 = vset.pattern.permute.xlu0 0
        %1326 = vperm.xlu0 %1325, %v839
        %v1327 = vpop.permute.xlu0 %1326
        %1328 = vset.pattern.permute.xlu0 0
        %1329 = vperm.xlu0 %1328, %v840
        %v1330 = vpop.permute.xlu0 %1329
        %1331 = vset.pattern.permute.xlu0 0
        %1332 = vperm.xlu0 %1331, %v841
        %v1333 = vpop.permute.xlu0 %1332
        %1334 = vset.pattern.permute.xlu0 0
        %1335 = vperm.xlu0 %1334, %v842
        %v1336 = vpop.permute.xlu0 %1335
        %1337 = vset.pattern.permute.xlu0 0
        %1338 = vperm.xlu0 %1337, %v843
        %v1339 = vpop.permute.xlu0 %1338
        %1340 = vset.pattern.permute.xlu0 0
        %1341 = vperm.xlu0 %1340, %v844
        %v1342 = vpop.permute.xlu0 %1341
        %1343 = vset.pattern.permute.xlu0 0
        %1344 = vperm.xlu0 %1343, %v845
        %v1345 = vpop.permute.xlu0 %1344
        %1346 = vset.pattern.permute.xlu0 0
        %1347 = vperm.xlu0 %1346, %v846
        %v1348 = vpop.permute.xlu0 %1347
        %1349 = vset.pattern.permute.xlu0 0
        %1350 = vperm.xlu0 %1349, %v847
        %v1351 = vpop.permute.xlu0 %1350
        %1352 = vset.pattern.permute.xlu0 0
        %1353 = vperm.xlu0 %1352, %v848
        %v1354 = vpop.permute.xlu0 %1353
        %1355 = vset.pattern.permute.xlu0 0
        %1356 = vperm.xlu0 %1355, %v849
        %v1357 = vpop.permute.xlu0 %1356
        %1358 = vset.pattern.permute.xlu0 0
        %1359 = vperm.xlu0 %1358, %v850
        %v1360 = vpop.permute.xlu0 %1359
        %1361 = vset.pattern.permute.xlu0 0
        %1362 = vperm.xlu0 %1361, %v851
        %v1363 = vpop.permute.xlu0 %1362
        %v1364 = vlaneseq
        %v1365 = vand.u32 %v1364, 127
        %v1366 = vlaneseq
        %v1367 = vshrl.u32 %v1366, 7
        %v1368 = vsub.s32 %v1365, %v1367
        %v1369 = vrot.slane %v982, %v1368
        %v1370 = vadd.s32 %v1365, 4294967288
        %v1371 = vlaneseq
        %v1372 = vshrl.u32 %v1371, 7
        %v1373 = vsub.s32 %v1370, %v1372
        %v1374 = vrot.slane %v985, %v1373
        %vm1375 = vcmask 130112
        %v1376 = vsel %vm1375, %v1374, %v1369
        %v1377 = vlaneseq
        %v1378 = vshrl.u32 %v1377, 7
        %v1379 = vsub.s32 %v1365, %v1378
        %v1380 = vrot.slane %v988, %v1379
        %v1381 = vlaneseq
        %v1382 = vshrl.u32 %v1381, 7
        %v1383 = vsub.s32 %v1370, %v1382
        %v1384 = vrot.slane %v991, %v1383
        %v1385 = vsel %vm1375, %v1384, %v1380
        %v1386 = vlaneseq
        %v1387 = vshrl.u32 %v1386, 7
        %v1388 = vsub.s32 %v1365, %v1387
        %v1389 = vrot.slane %v994, %v1388
        %v1390 = vlaneseq
        %v1391 = vshrl.u32 %v1390, 7
        %v1392 = vsub.s32 %v1370, %v1391
        %v1393 = vrot.slane %v997, %v1392
        %v1394 = vsel %vm1375, %v1393, %v1389
        %v1395 = vlaneseq
        %v1396 = vshrl.u32 %v1395, 7
        %v1397 = vsub.s32 %v1365, %v1396
        %v1398 = vrot.slane %v1000, %v1397
        %v1399 = vlaneseq
        %v1400 = vshrl.u32 %v1399, 7
        %v1401 = vsub.s32 %v1370, %v1400
        %v1402 = vrot.slane %v1003, %v1401
        %v1403 = vsel %vm1375, %v1402, %v1398
        %v1404 = vlaneseq
        %v1405 = vshrl.u32 %v1404, 7
        %v1406 = vsub.s32 %v1365, %v1405
        %v1407 = vrot.slane %v1006, %v1406
        %v1408 = vlaneseq
        %v1409 = vshrl.u32 %v1408, 7
        %v1410 = vsub.s32 %v1370, %v1409
        %v1411 = vrot.slane %v1009, %v1410
        %v1412 = vsel %vm1375, %v1411, %v1407
        %v1413 = vlaneseq
        %v1414 = vshrl.u32 %v1413, 7
        %v1415 = vsub.s32 %v1365, %v1414
        %v1416 = vrot.slane %v1012, %v1415
        %v1417 = vlaneseq
        %v1418 = vshrl.u32 %v1417, 7
        %v1419 = vsub.s32 %v1370, %v1418
        %v1420 = vrot.slane %v1015, %v1419
        %v1421 = vsel %vm1375, %v1420, %v1416
        %v1422 = vlaneseq
        %v1423 = vshrl.u32 %v1422, 7
        %v1424 = vsub.s32 %v1365, %v1423
        %v1425 = vrot.slane %v1018, %v1424
        %v1426 = vlaneseq
        %v1427 = vshrl.u32 %v1426, 7
        %v1428 = vsub.s32 %v1370, %v1427
        %v1429 = vrot.slane %v1021, %v1428
        %v1430 = vsel %vm1375, %v1429, %v1425
        %v1431 = vlaneseq
        %v1432 = vshrl.u32 %v1431, 7
        %v1433 = vsub.s32 %v1365, %v1432
        %v1434 = vrot.slane %v1024, %v1433
        %v1435 = vlaneseq
        %v1436 = vshrl.u32 %v1435, 7
        %v1437 = vsub.s32 %v1370, %v1436
        %v1438 = vrot.slane %v1027, %v1437
        %v1439 = vsel %vm1375, %v1438, %v1434
        %v1440 = vlaneseq
        %v1441 = vshrl.u32 %v1440, 7
        %v1442 = vsub.s32 %v1365, %v1441
        %v1443 = vrot.slane %v1030, %v1442
        %v1444 = vlaneseq
        %v1445 = vshrl.u32 %v1444, 7
        %v1446 = vsub.s32 %v1370, %v1445
        %v1447 = vrot.slane %v1033, %v1446
        %v1448 = vsel %vm1375, %v1447, %v1443
        %v1449 = vlaneseq
        %v1450 = vshrl.u32 %v1449, 7
        %v1451 = vsub.s32 %v1365, %v1450
        %v1452 = vrot.slane %v1036, %v1451
        %v1453 = vlaneseq
        %v1454 = vshrl.u32 %v1453, 7
        %v1455 = vsub.s32 %v1370, %v1454
        %v1456 = vrot.slane %v1039, %v1455
        %v1457 = vsel %vm1375, %v1456, %v1452
        %v1458 = vlaneseq
        %v1459 = vshrl.u32 %v1458, 7
        %v1460 = vsub.s32 %v1365, %v1459
        %v1461 = vrot.slane %v1042, %v1460
        %v1462 = vlaneseq
        %v1463 = vshrl.u32 %v1462, 7
        %v1464 = vsub.s32 %v1370, %v1463
        %v1465 = vrot.slane %v1045, %v1464
        %v1466 = vsel %vm1375, %v1465, %v1461
        %v1467 = vlaneseq
        %v1468 = vshrl.u32 %v1467, 7
        %v1469 = vsub.s32 %v1365, %v1468
        %v1470 = vrot.slane %v1048, %v1469
        %v1471 = vlaneseq
        %v1472 = vshrl.u32 %v1471, 7
        %v1473 = vsub.s32 %v1370, %v1472
        %v1474 = vrot.slane %v1051, %v1473
        %v1475 = vsel %vm1375, %v1474, %v1470
        %v1476 = vlaneseq
        %v1477 = vshrl.u32 %v1476, 7
        %v1478 = vsub.s32 %v1365, %v1477
        %v1479 = vrot.slane %v1054, %v1478
        %v1480 = vlaneseq
        %v1481 = vshrl.u32 %v1480, 7
        %v1482 = vsub.s32 %v1370, %v1481
        %v1483 = vrot.slane %v1057, %v1482
        %v1484 = vsel %vm1375, %v1483, %v1479
        %v1485 = vlaneseq
        %v1486 = vshrl.u32 %v1485, 7
        %v1487 = vsub.s32 %v1365, %v1486
        %v1488 = vrot.slane %v1060, %v1487
        %v1489 = vlaneseq
        %v1490 = vshrl.u32 %v1489, 7
        %v1491 = vsub.s32 %v1370, %v1490
        %v1492 = vrot.slane %v1063, %v1491
        %v1493 = vsel %vm1375, %v1492, %v1488
        %v1494 = vlaneseq
        %v1495 = vshrl.u32 %v1494, 7
        %v1496 = vsub.s32 %v1365, %v1495
        %v1497 = vrot.slane %v1066, %v1496
        %v1498 = vlaneseq
        %v1499 = vshrl.u32 %v1498, 7
        %v1500 = vsub.s32 %v1370, %v1499
        %v1501 = vrot.slane %v1069, %v1500
        %v1502 = vsel %vm1375, %v1501, %v1497
        %v1503 = vlaneseq
        %v1504 = vshrl.u32 %v1503, 7
        %v1505 = vsub.s32 %v1365, %v1504
        %v1506 = vrot.slane %v1072, %v1505
        %v1507 = vlaneseq
        %v1508 = vshrl.u32 %v1507, 7
        %v1509 = vsub.s32 %v1370, %v1508
        %v1510 = vrot.slane %v1075, %v1509
        %v1511 = vsel %vm1375, %v1510, %v1506
        %v1512 = vlaneseq
        %v1513 = vshrl.u32 %v1512, 7
        %v1514 = vsub.s32 %v1365, %v1513
        %v1515 = vrot.slane %v1078, %v1514
        %v1516 = vlaneseq
        %v1517 = vshrl.u32 %v1516, 7
        %v1518 = vsub.s32 %v1370, %v1517
        %v1519 = vrot.slane %v1081, %v1518
        %v1520 = vsel %vm1375, %v1519, %v1515
        %v1521 = vlaneseq
        %v1522 = vshrl.u32 %v1521, 7
        %v1523 = vsub.s32 %v1365, %v1522
        %v1524 = vrot.slane %v1084, %v1523
        %v1525 = vlaneseq
        %v1526 = vshrl.u32 %v1525, 7
        %v1527 = vsub.s32 %v1370, %v1526
        %v1528 = vrot.slane %v1087, %v1527
        %v1529 = vsel %vm1375, %v1528, %v1524
        %v1530 = vlaneseq
        %v1531 = vshrl.u32 %v1530, 7
        %v1532 = vsub.s32 %v1365, %v1531
        %v1533 = vrot.slane %v1090, %v1532
        %v1534 = vlaneseq
        %v1535 = vshrl.u32 %v1534, 7
        %v1536 = vsub.s32 %v1370, %v1535
        %v1537 = vrot.slane %v1093, %v1536
        %v1538 = vsel %vm1375, %v1537, %v1533
        %v1539 = vlaneseq
        %v1540 = vshrl.u32 %v1539, 7
        %v1541 = vsub.s32 %v1365, %v1540
        %v1542 = vrot.slane %v1096, %v1541
        %v1543 = vlaneseq
        %v1544 = vshrl.u32 %v1543, 7
        %v1545 = vsub.s32 %v1370, %v1544
        %v1546 = vrot.slane %v1099, %v1545
        %v1547 = vsel %vm1375, %v1546, %v1542
        %v1548 = vlaneseq
        %v1549 = vshrl.u32 %v1548, 7
        %v1550 = vsub.s32 %v1365, %v1549
        %v1551 = vrot.slane %v1102, %v1550
        %v1552 = vlaneseq
        %v1553 = vshrl.u32 %v1552, 7
        %v1554 = vsub.s32 %v1370, %v1553
        %v1555 = vrot.slane %v1105, %v1554
        %v1556 = vsel %vm1375, %v1555, %v1551
        %v1557 = vlaneseq
        %v1558 = vshrl.u32 %v1557, 7
        %v1559 = vsub.s32 %v1365, %v1558
        %v1560 = vrot.slane %v1108, %v1559
        %v1561 = vlaneseq
        %v1562 = vshrl.u32 %v1561, 7
        %v1563 = vsub.s32 %v1370, %v1562
        %v1564 = vrot.slane %v1111, %v1563
        %v1565 = vsel %vm1375, %v1564, %v1560
        %v1566 = vlaneseq
        %v1567 = vshrl.u32 %v1566, 7
        %v1568 = vsub.s32 %v1365, %v1567
        %v1569 = vrot.slane %v1114, %v1568
        %v1570 = vlaneseq
        %v1571 = vshrl.u32 %v1570, 7
        %v1572 = vsub.s32 %v1370, %v1571
        %v1573 = vrot.slane %v1117, %v1572
        %v1574 = vsel %vm1375, %v1573, %v1569
        %v1575 = vlaneseq
        %v1576 = vshrl.u32 %v1575, 7
        %v1577 = vsub.s32 %v1365, %v1576
        %v1578 = vrot.slane %v1120, %v1577
        %v1579 = vlaneseq
        %v1580 = vshrl.u32 %v1579, 7
        %v1581 = vsub.s32 %v1370, %v1580
        %v1582 = vrot.slane %v1123, %v1581
        %v1583 = vsel %vm1375, %v1582, %v1578
        %v1584 = vlaneseq
        %v1585 = vshrl.u32 %v1584, 7
        %v1586 = vsub.s32 %v1365, %v1585
        %v1587 = vrot.slane %v1126, %v1586
        %v1588 = vlaneseq
        %v1589 = vshrl.u32 %v1588, 7
        %v1590 = vsub.s32 %v1370, %v1589
        %v1591 = vrot.slane %v1129, %v1590
        %v1592 = vsel %vm1375, %v1591, %v1587
        %v1593 = vlaneseq
        %v1594 = vshrl.u32 %v1593, 7
        %v1595 = vsub.s32 %v1365, %v1594
        %v1596 = vrot.slane %v1132, %v1595
        %v1597 = vlaneseq
        %v1598 = vshrl.u32 %v1597, 7
        %v1599 = vsub.s32 %v1370, %v1598
        %v1600 = vrot.slane %v1135, %v1599
        %v1601 = vsel %vm1375, %v1600, %v1596
        %v1602 = vlaneseq
        %v1603 = vshrl.u32 %v1602, 7
        %v1604 = vsub.s32 %v1365, %v1603
        %v1605 = vrot.slane %v1138, %v1604
        %v1606 = vlaneseq
        %v1607 = vshrl.u32 %v1606, 7
        %v1608 = vsub.s32 %v1370, %v1607
        %v1609 = vrot.slane %v1141, %v1608
        %v1610 = vsel %vm1375, %v1609, %v1605
        %v1611 = vlaneseq
        %v1612 = vshrl.u32 %v1611, 7
        %v1613 = vsub.s32 %v1365, %v1612
        %v1614 = vrot.slane %v1144, %v1613
        %v1615 = vlaneseq
        %v1616 = vshrl.u32 %v1615, 7
        %v1617 = vsub.s32 %v1370, %v1616
        %v1618 = vrot.slane %v1147, %v1617
        %v1619 = vsel %vm1375, %v1618, %v1614
        %v1620 = vlaneseq
        %v1621 = vshrl.u32 %v1620, 7
        %v1622 = vsub.s32 %v1365, %v1621
        %v1623 = vrot.slane %v1150, %v1622
        %v1624 = vlaneseq
        %v1625 = vshrl.u32 %v1624, 7
        %v1626 = vsub.s32 %v1370, %v1625
        %v1627 = vrot.slane %v1153, %v1626
        %v1628 = vsel %vm1375, %v1627, %v1623
        %v1629 = vlaneseq
        %v1630 = vshrl.u32 %v1629, 7
        %v1631 = vsub.s32 %v1365, %v1630
        %v1632 = vrot.slane %v1156, %v1631
        %v1633 = vlaneseq
        %v1634 = vshrl.u32 %v1633, 7
        %v1635 = vsub.s32 %v1370, %v1634
        %v1636 = vrot.slane %v1159, %v1635
        %v1637 = vsel %vm1375, %v1636, %v1632
        %v1638 = vlaneseq
        %v1639 = vshrl.u32 %v1638, 7
        %v1640 = vsub.s32 %v1365, %v1639
        %v1641 = vrot.slane %v1162, %v1640
        %v1642 = vlaneseq
        %v1643 = vshrl.u32 %v1642, 7
        %v1644 = vsub.s32 %v1370, %v1643
        %v1645 = vrot.slane %v1165, %v1644
        %v1646 = vsel %vm1375, %v1645, %v1641
        %v1647 = vlaneseq
        %v1648 = vshrl.u32 %v1647, 7
        %v1649 = vsub.s32 %v1365, %v1648
        %v1650 = vrot.slane %v1168, %v1649
        %v1651 = vlaneseq
        %v1652 = vshrl.u32 %v1651, 7
        %v1653 = vsub.s32 %v1370, %v1652
        %v1654 = vrot.slane %v1171, %v1653
        %v1655 = vsel %vm1375, %v1654, %v1650
        %v1656 = vlaneseq
        %v1657 = vshrl.u32 %v1656, 7
        %v1658 = vsub.s32 %v1365, %v1657
        %v1659 = vrot.slane %v1174, %v1658
        %v1660 = vlaneseq
        %v1661 = vshrl.u32 %v1660, 7
        %v1662 = vsub.s32 %v1370, %v1661
        %v1663 = vrot.slane %v1177, %v1662
        %v1664 = vsel %vm1375, %v1663, %v1659
        %v1665 = vlaneseq
        %v1666 = vshrl.u32 %v1665, 7
        %v1667 = vsub.s32 %v1365, %v1666
        %v1668 = vrot.slane %v1180, %v1667
        %v1669 = vlaneseq
        %v1670 = vshrl.u32 %v1669, 7
        %v1671 = vsub.s32 %v1370, %v1670
        %v1672 = vrot.slane %v1183, %v1671
        %v1673 = vsel %vm1375, %v1672, %v1668
        %v1674 = vlaneseq
        %v1675 = vshrl.u32 %v1674, 7
        %v1676 = vsub.s32 %v1365, %v1675
        %v1677 = vrot.slane %v1186, %v1676
        %v1678 = vlaneseq
        %v1679 = vshrl.u32 %v1678, 7
        %v1680 = vsub.s32 %v1370, %v1679
        %v1681 = vrot.slane %v1189, %v1680
        %v1682 = vsel %vm1375, %v1681, %v1677
        %v1683 = vlaneseq
        %v1684 = vshrl.u32 %v1683, 7
        %v1685 = vsub.s32 %v1365, %v1684
        %v1686 = vrot.slane %v1192, %v1685
        %v1687 = vlaneseq
        %v1688 = vshrl.u32 %v1687, 7
        %v1689 = vsub.s32 %v1370, %v1688
        %v1690 = vrot.slane %v1195, %v1689
        %v1691 = vsel %vm1375, %v1690, %v1686
        %v1692 = vlaneseq
        %v1693 = vshrl.u32 %v1692, 7
        %v1694 = vsub.s32 %v1365, %v1693
        %v1695 = vrot.slane %v1198, %v1694
        %v1696 = vlaneseq
        %v1697 = vshrl.u32 %v1696, 7
        %v1698 = vsub.s32 %v1370, %v1697
        %v1699 = vrot.slane %v1201, %v1698
        %v1700 = vsel %vm1375, %v1699, %v1695
        %v1701 = vlaneseq
        %v1702 = vshrl.u32 %v1701, 7
        %v1703 = vsub.s32 %v1365, %v1702
        %v1704 = vrot.slane %v1204, %v1703
        %v1705 = vlaneseq
        %v1706 = vshrl.u32 %v1705, 7
        %v1707 = vsub.s32 %v1370, %v1706
        %v1708 = vrot.slane %v1207, %v1707
        %v1709 = vsel %vm1375, %v1708, %v1704
        %v1710 = vlaneseq
        %v1711 = vshrl.u32 %v1710, 7
        %v1712 = vsub.s32 %v1365, %v1711
        %v1713 = vrot.slane %v1210, %v1712
        %v1714 = vlaneseq
        %v1715 = vshrl.u32 %v1714, 7
        %v1716 = vsub.s32 %v1370, %v1715
        %v1717 = vrot.slane %v1213, %v1716
        %v1718 = vsel %vm1375, %v1717, %v1713
        %v1719 = vlaneseq
        %v1720 = vshrl.u32 %v1719, 7
        %v1721 = vsub.s32 %v1365, %v1720
        %v1722 = vrot.slane %v1216, %v1721
        %v1723 = vlaneseq
        %v1724 = vshrl.u32 %v1723, 7
        %v1725 = vsub.s32 %v1370, %v1724
        %v1726 = vrot.slane %v1219, %v1725
        %v1727 = vsel %vm1375, %v1726, %v1722
        %v1728 = vlaneseq
        %v1729 = vshrl.u32 %v1728, 7
        %v1730 = vsub.s32 %v1365, %v1729
        %v1731 = vrot.slane %v1222, %v1730
        %v1732 = vlaneseq
        %v1733 = vshrl.u32 %v1732, 7
        %v1734 = vsub.s32 %v1370, %v1733
        %v1735 = vrot.slane %v1225, %v1734
        %v1736 = vsel %vm1375, %v1735, %v1731
        %v1737 = vlaneseq
        %v1738 = vshrl.u32 %v1737, 7
        %v1739 = vsub.s32 %v1365, %v1738
        %v1740 = vrot.slane %v1228, %v1739
        %v1741 = vlaneseq
        %v1742 = vshrl.u32 %v1741, 7
        %v1743 = vsub.s32 %v1370, %v1742
        %v1744 = vrot.slane %v1231, %v1743
        %v1745 = vsel %vm1375, %v1744, %v1740
        %v1746 = vlaneseq
        %v1747 = vshrl.u32 %v1746, 7
        %v1748 = vsub.s32 %v1365, %v1747
        %v1749 = vrot.slane %v1234, %v1748
        %v1750 = vlaneseq
        %v1751 = vshrl.u32 %v1750, 7
        %v1752 = vsub.s32 %v1370, %v1751
        %v1753 = vrot.slane %v1237, %v1752
        %v1754 = vsel %vm1375, %v1753, %v1749
        %v1755 = vlaneseq
        %v1756 = vshrl.u32 %v1755, 7
        %v1757 = vsub.s32 %v1365, %v1756
        %v1758 = vrot.slane %v1240, %v1757
        %v1759 = vlaneseq
        %v1760 = vshrl.u32 %v1759, 7
        %v1761 = vsub.s32 %v1370, %v1760
        %v1762 = vrot.slane %v1243, %v1761
        %v1763 = vsel %vm1375, %v1762, %v1758
        %v1764 = vlaneseq
        %v1765 = vshrl.u32 %v1764, 7
        %v1766 = vsub.s32 %v1365, %v1765
        %v1767 = vrot.slane %v1246, %v1766
        %v1768 = vlaneseq
        %v1769 = vshrl.u32 %v1768, 7
        %v1770 = vsub.s32 %v1370, %v1769
        %v1771 = vrot.slane %v1249, %v1770
        %v1772 = vsel %vm1375, %v1771, %v1767
        %v1773 = vlaneseq
        %v1774 = vshrl.u32 %v1773, 7
        %v1775 = vsub.s32 %v1365, %v1774
        %v1776 = vrot.slane %v1252, %v1775
        %v1777 = vlaneseq
        %v1778 = vshrl.u32 %v1777, 7
        %v1779 = vsub.s32 %v1370, %v1778
        %v1780 = vrot.slane %v1255, %v1779
        %v1781 = vsel %vm1375, %v1780, %v1776
        %v1782 = vlaneseq
        %v1783 = vshrl.u32 %v1782, 7
        %v1784 = vsub.s32 %v1365, %v1783
        %v1785 = vrot.slane %v1258, %v1784
        %v1786 = vlaneseq
        %v1787 = vshrl.u32 %v1786, 7
        %v1788 = vsub.s32 %v1370, %v1787
        %v1789 = vrot.slane %v1261, %v1788
        %v1790 = vsel %vm1375, %v1789, %v1785
        %v1791 = vlaneseq
        %v1792 = vshrl.u32 %v1791, 7
        %v1793 = vsub.s32 %v1365, %v1792
        %v1794 = vrot.slane %v1264, %v1793
        %v1795 = vlaneseq
        %v1796 = vshrl.u32 %v1795, 7
        %v1797 = vsub.s32 %v1370, %v1796
        %v1798 = vrot.slane %v1267, %v1797
        %v1799 = vsel %vm1375, %v1798, %v1794
        %v1800 = vlaneseq
        %v1801 = vshrl.u32 %v1800, 7
        %v1802 = vsub.s32 %v1365, %v1801
        %v1803 = vrot.slane %v1270, %v1802
        %v1804 = vlaneseq
        %v1805 = vshrl.u32 %v1804, 7
        %v1806 = vsub.s32 %v1370, %v1805
        %v1807 = vrot.slane %v1273, %v1806
        %v1808 = vsel %vm1375, %v1807, %v1803
        %v1809 = vlaneseq
        %v1810 = vshrl.u32 %v1809, 7
        %v1811 = vsub.s32 %v1365, %v1810
        %v1812 = vrot.slane %v1276, %v1811
        %v1813 = vlaneseq
        %v1814 = vshrl.u32 %v1813, 7
        %v1815 = vsub.s32 %v1370, %v1814
        %v1816 = vrot.slane %v1279, %v1815
        %v1817 = vsel %vm1375, %v1816, %v1812
        %v1818 = vlaneseq
        %v1819 = vshrl.u32 %v1818, 7
        %v1820 = vsub.s32 %v1365, %v1819
        %v1821 = vrot.slane %v1282, %v1820
        %v1822 = vlaneseq
        %v1823 = vshrl.u32 %v1822, 7
        %v1824 = vsub.s32 %v1370, %v1823
        %v1825 = vrot.slane %v1285, %v1824
        %v1826 = vsel %vm1375, %v1825, %v1821
        %v1827 = vlaneseq
        %v1828 = vshrl.u32 %v1827, 7
        %v1829 = vsub.s32 %v1365, %v1828
        %v1830 = vrot.slane %v1288, %v1829
        %v1831 = vlaneseq
        %v1832 = vshrl.u32 %v1831, 7
        %v1833 = vsub.s32 %v1370, %v1832
        %v1834 = vrot.slane %v1291, %v1833
        %v1835 = vsel %vm1375, %v1834, %v1830
        %v1836 = vlaneseq
        %v1837 = vshrl.u32 %v1836, 7
        %v1838 = vsub.s32 %v1365, %v1837
        %v1839 = vrot.slane %v1294, %v1838
        %v1840 = vlaneseq
        %v1841 = vshrl.u32 %v1840, 7
        %v1842 = vsub.s32 %v1370, %v1841
        %v1843 = vrot.slane %v1297, %v1842
        %v1844 = vsel %vm1375, %v1843, %v1839
        %v1845 = vlaneseq
        %v1846 = vshrl.u32 %v1845, 7
        %v1847 = vsub.s32 %v1365, %v1846
        %v1848 = vrot.slane %v1300, %v1847
        %v1849 = vlaneseq
        %v1850 = vshrl.u32 %v1849, 7
        %v1851 = vsub.s32 %v1370, %v1850
        %v1852 = vrot.slane %v1303, %v1851
        %v1853 = vsel %vm1375, %v1852, %v1848
        %v1854 = vlaneseq
        %v1855 = vshrl.u32 %v1854, 7
        %v1856 = vsub.s32 %v1365, %v1855
        %v1857 = vrot.slane %v1306, %v1856
        %v1858 = vlaneseq
        %v1859 = vshrl.u32 %v1858, 7
        %v1860 = vsub.s32 %v1370, %v1859
        %v1861 = vrot.slane %v1309, %v1860
        %v1862 = vsel %vm1375, %v1861, %v1857
        %v1863 = vlaneseq
        %v1864 = vshrl.u32 %v1863, 7
        %v1865 = vsub.s32 %v1365, %v1864
        %v1866 = vrot.slane %v1312, %v1865
        %v1867 = vlaneseq
        %v1868 = vshrl.u32 %v1867, 7
        %v1869 = vsub.s32 %v1370, %v1868
        %v1870 = vrot.slane %v1315, %v1869
        %v1871 = vsel %vm1375, %v1870, %v1866
        %v1872 = vlaneseq
        %v1873 = vshrl.u32 %v1872, 7
        %v1874 = vsub.s32 %v1365, %v1873
        %v1875 = vrot.slane %v1318, %v1874
        %v1876 = vlaneseq
        %v1877 = vshrl.u32 %v1876, 7
        %v1878 = vsub.s32 %v1370, %v1877
        %v1879 = vrot.slane %v1321, %v1878
        %v1880 = vsel %vm1375, %v1879, %v1875
        %v1881 = vlaneseq
        %v1882 = vshrl.u32 %v1881, 7
        %v1883 = vsub.s32 %v1365, %v1882
        %v1884 = vrot.slane %v1324, %v1883
        %v1885 = vlaneseq
        %v1886 = vshrl.u32 %v1885, 7
        %v1887 = vsub.s32 %v1370, %v1886
        %v1888 = vrot.slane %v1327, %v1887
        %v1889 = vsel %vm1375, %v1888, %v1884
        %v1890 = vlaneseq
        %v1891 = vshrl.u32 %v1890, 7
        %v1892 = vsub.s32 %v1365, %v1891
        %v1893 = vrot.slane %v1330, %v1892
        %v1894 = vlaneseq
        %v1895 = vshrl.u32 %v1894, 7
        %v1896 = vsub.s32 %v1370, %v1895
        %v1897 = vrot.slane %v1333, %v1896
        %v1898 = vsel %vm1375, %v1897, %v1893
        %v1899 = vlaneseq
        %v1900 = vshrl.u32 %v1899, 7
        %v1901 = vsub.s32 %v1365, %v1900
        %v1902 = vrot.slane %v1336, %v1901
        %v1903 = vlaneseq
        %v1904 = vshrl.u32 %v1903, 7
        %v1905 = vsub.s32 %v1370, %v1904
        %v1906 = vrot.slane %v1339, %v1905
        %v1907 = vsel %vm1375, %v1906, %v1902
        %v1908 = vlaneseq
        %v1909 = vshrl.u32 %v1908, 7
        %v1910 = vsub.s32 %v1365, %v1909
        %v1911 = vrot.slane %v1342, %v1910
        %v1912 = vlaneseq
        %v1913 = vshrl.u32 %v1912, 7
        %v1914 = vsub.s32 %v1370, %v1913
        %v1915 = vrot.slane %v1345, %v1914
        %v1916 = vsel %vm1375, %v1915, %v1911
        %v1917 = vlaneseq
        %v1918 = vshrl.u32 %v1917, 7
        %v1919 = vsub.s32 %v1365, %v1918
        %v1920 = vrot.slane %v1348, %v1919
        %v1921 = vlaneseq
        %v1922 = vshrl.u32 %v1921, 7
        %v1923 = vsub.s32 %v1370, %v1922
        %v1924 = vrot.slane %v1351, %v1923
        %v1925 = vsel %vm1375, %v1924, %v1920
        %v1926 = vlaneseq
        %v1927 = vshrl.u32 %v1926, 7
        %v1928 = vsub.s32 %v1365, %v1927
        %v1929 = vrot.slane %v1354, %v1928
        %v1930 = vlaneseq
        %v1931 = vshrl.u32 %v1930, 7
        %v1932 = vsub.s32 %v1370, %v1931
        %v1933 = vrot.slane %v1357, %v1932
        %v1934 = vsel %vm1375, %v1933, %v1929
        %v1935 = vlaneseq
        %v1936 = vshrl.u32 %v1935, 7
        %v1937 = vsub.s32 %v1365, %v1936
        %v1938 = vrot.slane %v1360, %v1937
        %v1939 = vlaneseq
        %v1940 = vshrl.u32 %v1939, 7
        %v1941 = vsub.s32 %v1370, %v1940
        %v1942 = vrot.slane %v1363, %v1941
        %v1943 = vsel %vm1375, %v1942, %v1938
        %vm1944 = vcmask 1041409
        %v1945 = vsel %vm1944, %v1385, %v1376
        %vm1946 = vcmask 1042434
        %v1947 = vsel %vm1946, %v1394, %v1945
        %vm1948 = vcmask 1043459
        %v1949 = vsel %vm1948, %v1403, %v1947
        %vm1950 = vcmask 1044484
        %v1951 = vsel %vm1950, %v1412, %v1949
        %vm1952 = vcmask 1045509
        %v1953 = vsel %vm1952, %v1421, %v1951
        %vm1954 = vcmask 1046534
        %v1955 = vsel %vm1954, %v1430, %v1953
        %vm1956 = vcmask 1047559
        %v1957 = vsel %vm1956, %v1439, %v1955
        %v1958 = vsel %vm1944, %v1457, %v1448
        %v1959 = vsel %vm1946, %v1466, %v1958
        %v1960 = vsel %vm1948, %v1475, %v1959
        %v1961 = vsel %vm1950, %v1484, %v1960
        %v1962 = vsel %vm1952, %v1493, %v1961
        %v1963 = vsel %vm1954, %v1502, %v1962
        %v1964 = vsel %vm1956, %v1511, %v1963
        %v1965 = vsel %vm1944, %v1529, %v1520
        %v1966 = vsel %vm1946, %v1538, %v1965
        %v1967 = vsel %vm1948, %v1547, %v1966
        %v1968 = vsel %vm1950, %v1556, %v1967
        %v1969 = vsel %vm1952, %v1565, %v1968
        %v1970 = vsel %vm1954, %v1574, %v1969
        %v1971 = vsel %vm1956, %v1583, %v1970
        %v1972 = vsel %vm1944, %v1601, %v1592
        %v1973 = vsel %vm1946, %v1610, %v1972
        %v1974 = vsel %vm1948, %v1619, %v1973
        %v1975 = vsel %vm1950, %v1628, %v1974
        %v1976 = vsel %vm1952, %v1637, %v1975
        %v1977 = vsel %vm1954, %v1646, %v1976
        %v1978 = vsel %vm1956, %v1655, %v1977
        %v1979 = vsel %vm1944, %v1673, %v1664
        %v1980 = vsel %vm1946, %v1682, %v1979
        %v1981 = vsel %vm1948, %v1691, %v1980
        %v1982 = vsel %vm1950, %v1700, %v1981
        %v1983 = vsel %vm1952, %v1709, %v1982
        %v1984 = vsel %vm1954, %v1718, %v1983
        %v1985 = vsel %vm1956, %v1727, %v1984
        %v1986 = vsel %vm1944, %v1745, %v1736
        %v1987 = vsel %vm1946, %v1754, %v1986
        %v1988 = vsel %vm1948, %v1763, %v1987
        %v1989 = vsel %vm1950, %v1772, %v1988
        %v1990 = vsel %vm1952, %v1781, %v1989
        %v1991 = vsel %vm1954, %v1790, %v1990
        %v1992 = vsel %vm1956, %v1799, %v1991
        %v1993 = vsel %vm1944, %v1817, %v1808
        %v1994 = vsel %vm1946, %v1826, %v1993
        %v1995 = vsel %vm1948, %v1835, %v1994
        %v1996 = vsel %vm1950, %v1844, %v1995
        %v1997 = vsel %vm1952, %v1853, %v1996
        %v1998 = vsel %vm1954, %v1862, %v1997
        %v1999 = vsel %vm1956, %v1871, %v1998
        %v2000 = vsel %vm1944, %v1889, %v1880
        %v2001 = vsel %vm1946, %v1898, %v2000
        %v2002 = vsel %vm1948, %v1907, %v2001
        %v2003 = vsel %vm1950, %v1916, %v2002
        %v2004 = vsel %vm1952, %v1925, %v2003
        %v2005 = vsel %vm1954, %v1934, %v2004
        %v2006 = vsel %vm1956, %v1943, %v2005
        %vm2015 = vcmask 130048
        %v2016 = vsel %vm2015, %v1957, 0.0
        %2017 = vadd.xlane.f32.xlu0 %v2016
        %v2018 = vpop.xlane.xlu0 %2017
        %v2019 = vsel %vm2015, %v1964, 0.0
        %2020 = vadd.xlane.f32.xlu0 %v2019
        %v2021 = vpop.xlane.xlu0 %2020
        %v2022 = vsel %vm2015, %v1971, 0.0
        %2023 = vadd.xlane.f32.xlu0 %v2022
        %v2024 = vpop.xlane.xlu0 %2023
        %v2025 = vsel %vm2015, %v1978, 0.0
        %2026 = vadd.xlane.f32.xlu0 %v2025
        %v2027 = vpop.xlane.xlu0 %2026
        %v2028 = vsel %vm2015, %v1985, 0.0
        %2029 = vadd.xlane.f32.xlu0 %v2028
        %v2030 = vpop.xlane.xlu0 %2029
        %v2031 = vsel %vm2015, %v1992, 0.0
        %2032 = vadd.xlane.f32.xlu0 %v2031
        %v2033 = vpop.xlane.xlu0 %2032
        %v2034 = vsel %vm2015, %v1999, 0.0
        %2035 = vadd.xlane.f32.xlu0 %v2034
        %v2036 = vpop.xlane.xlu0 %2035
        %v2037 = vsel %vm2015, %v2006, 0.0
        %2038 = vadd.xlane.f32.xlu0 %v2037
        %v2039 = vpop.xlane.xlu0 %2038
        %v2041 = vlaneseq
        %v2042 = vshrl.u32 %v2041, 7
        %v2043 = vsub.s32 0, %v2042
        %v2044 = vrot.slane %v300, %v2043
        %2046 = vbcast.lane.b32.xlu0 %v2044, 256
        %v2047 = vpop.permute.xlu0 %2046
        %s2049 = sor.u32 256, 8
        %2050 = vbcast.lane.b32.xlu0 %v2044, %s2049
        %v2051 = vpop.permute.xlu0 %2050
        %s2053 = sor.u32 256, 16
        %2054 = vbcast.lane.b32.xlu0 %v2044, %s2053
        %v2055 = vpop.permute.xlu0 %2054
        %s2057 = sor.u32 256, 24
        %2058 = vbcast.lane.b32.xlu0 %v2044, %s2057
        %v2059 = vpop.permute.xlu0 %2058
        %v2064 = vadd.f32 %v2018, %v2047
        %v2065 = vadd.f32 %v2021, %v2051
        %v2066 = vadd.f32 %v2024, %v2055
        %v2067 = vadd.f32 %v2027, %v2059
        %v2068 = vadd.f32 %v2030, %v2047
        %v2069 = vadd.f32 %v2033, %v2051
        %v2070 = vadd.f32 %v2036, %v2055
        %v2071 = vadd.f32 %v2039, %v2059
        %v2072 = vmax.f32 %v2064, 0.0
        %v2073 = vmax.f32 %v2065, 0.0
        %v2074 = vmax.f32 %v2066, 0.0
        %v2075 = vmax.f32 %v2067, 0.0
        %v2076 = vmax.f32 %v2068, 0.0
        %v2077 = vmax.f32 %v2069, 0.0
        %v2078 = vmax.f32 %v2070, 0.0
        %v2079 = vmax.f32 %v2071, 0.0
        %v2082 = vlaneseq
        %v2083 = vshrl.u32 %v2082, 7
        %v2084 = vsub.s32 0, %v2083
        %v2085 = vrot.slane %v301, %v2084
        %2087 = vbcast.lane.b32.xlu0 %v2085, 256
        %v2088 = vpop.permute.xlu0 %2087
        %s2090 = sor.u32 256, 8
        %2091 = vbcast.lane.b32.xlu0 %v2085, %s2090
        %v2092 = vpop.permute.xlu0 %2091
        %s2094 = sor.u32 256, 16
        %2095 = vbcast.lane.b32.xlu0 %v2085, %s2094
        %v2096 = vpop.permute.xlu0 %2095
        %s2098 = sor.u32 256, 24
        %2099 = vbcast.lane.b32.xlu0 %v2085, %s2098
        %v2100 = vpop.permute.xlu0 %2099
        %v2101 = vlaneseq
        %v2102 = vshrl.u32 %v2101, 7
        %v2103 = vsub.s32 1, %v2102
        %v2104 = vrot.slane %v301, %v2103
        %2106 = vbcast.lane.b32.xlu0 %v2104, 256
        %v2107 = vpop.permute.xlu0 %2106
        %s2109 = sor.u32 256, 8
        %2110 = vbcast.lane.b32.xlu0 %v2104, %s2109
        %v2111 = vpop.permute.xlu0 %2110
        %s2113 = sor.u32 256, 16
        %2114 = vbcast.lane.b32.xlu0 %v2104, %s2113
        %v2115 = vpop.permute.xlu0 %2114
        %s2117 = sor.u32 256, 24
        %2118 = vbcast.lane.b32.xlu0 %v2104, %s2117
        %v2119 = vpop.permute.xlu0 %2118
        %v2120 = vlaneseq
        %v2121 = vshrl.u32 %v2120, 7
        %v2122 = vsub.s32 2, %v2121
        %v2123 = vrot.slane %v301, %v2122
        %2125 = vbcast.lane.b32.xlu0 %v2123, 256
        %v2126 = vpop.permute.xlu0 %2125
        %s2128 = sor.u32 256, 8
        %2129 = vbcast.lane.b32.xlu0 %v2123, %s2128
        %v2130 = vpop.permute.xlu0 %2129
        %s2132 = sor.u32 256, 16
        %2133 = vbcast.lane.b32.xlu0 %v2123, %s2132
        %v2134 = vpop.permute.xlu0 %2133
        %s2136 = sor.u32 256, 24
        %2137 = vbcast.lane.b32.xlu0 %v2123, %s2136
        %v2138 = vpop.permute.xlu0 %2137
        %v2139 = vlaneseq
        %v2140 = vshrl.u32 %v2139, 7
        %v2141 = vsub.s32 3, %v2140
        %v2142 = vrot.slane %v301, %v2141
        %2144 = vbcast.lane.b32.xlu0 %v2142, 256
        %v2145 = vpop.permute.xlu0 %2144
        %s2147 = sor.u32 256, 8
        %2148 = vbcast.lane.b32.xlu0 %v2142, %s2147
        %v2149 = vpop.permute.xlu0 %2148
        %s2151 = sor.u32 256, 16
        %2152 = vbcast.lane.b32.xlu0 %v2142, %s2151
        %v2153 = vpop.permute.xlu0 %2152
        %s2155 = sor.u32 256, 24
        %2156 = vbcast.lane.b32.xlu0 %v2142, %s2155
        %v2157 = vpop.permute.xlu0 %2156
        %v2158 = vlaneseq
        %v2159 = vshrl.u32 %v2158, 7
        %v2160 = vsub.s32 4, %v2159
        %v2161 = vrot.slane %v301, %v2160
        %2163 = vbcast.lane.b32.xlu0 %v2161, 256
        %v2164 = vpop.permute.xlu0 %2163
        %s2166 = sor.u32 256, 8
        %2167 = vbcast.lane.b32.xlu0 %v2161, %s2166
        %v2168 = vpop.permute.xlu0 %2167
        %s2170 = sor.u32 256, 16
        %2171 = vbcast.lane.b32.xlu0 %v2161, %s2170
        %v2172 = vpop.permute.xlu0 %2171
        %s2174 = sor.u32 256, 24
        %2175 = vbcast.lane.b32.xlu0 %v2161, %s2174
        %v2176 = vpop.permute.xlu0 %2175
        %v2177 = vlaneseq
        %v2178 = vshrl.u32 %v2177, 7
        %v2179 = vsub.s32 5, %v2178
        %v2180 = vrot.slane %v301, %v2179
        %2182 = vbcast.lane.b32.xlu0 %v2180, 256
        %v2183 = vpop.permute.xlu0 %2182
        %s2185 = sor.u32 256, 8
        %2186 = vbcast.lane.b32.xlu0 %v2180, %s2185
        %v2187 = vpop.permute.xlu0 %2186
        %s2189 = sor.u32 256, 16
        %2190 = vbcast.lane.b32.xlu0 %v2180, %s2189
        %v2191 = vpop.permute.xlu0 %2190
        %s2193 = sor.u32 256, 24
        %2194 = vbcast.lane.b32.xlu0 %v2180, %s2193
        %v2195 = vpop.permute.xlu0 %2194
        %v2196 = vlaneseq
        %v2197 = vshrl.u32 %v2196, 7
        %v2198 = vsub.s32 6, %v2197
        %v2199 = vrot.slane %v301, %v2198
        %2201 = vbcast.lane.b32.xlu0 %v2199, 256
        %v2202 = vpop.permute.xlu0 %2201
        %s2204 = sor.u32 256, 8
        %2205 = vbcast.lane.b32.xlu0 %v2199, %s2204
        %v2206 = vpop.permute.xlu0 %2205
        %s2208 = sor.u32 256, 16
        %2209 = vbcast.lane.b32.xlu0 %v2199, %s2208
        %v2210 = vpop.permute.xlu0 %2209
        %s2212 = sor.u32 256, 24
        %2213 = vbcast.lane.b32.xlu0 %v2199, %s2212
        %v2214 = vpop.permute.xlu0 %2213
        %v2215 = vlaneseq
        %v2216 = vshrl.u32 %v2215, 7
        %v2217 = vsub.s32 7, %v2216
        %v2218 = vrot.slane %v301, %v2217
        %2220 = vbcast.lane.b32.xlu0 %v2218, 256
        %v2221 = vpop.permute.xlu0 %2220
        %s2223 = sor.u32 256, 8
        %2224 = vbcast.lane.b32.xlu0 %v2218, %s2223
        %v2225 = vpop.permute.xlu0 %2224
        %s2227 = sor.u32 256, 16
        %2228 = vbcast.lane.b32.xlu0 %v2218, %s2227
        %v2229 = vpop.permute.xlu0 %2228
        %s2231 = sor.u32 256, 24
        %2232 = vbcast.lane.b32.xlu0 %v2218, %s2231
        %v2233 = vpop.permute.xlu0 %2232
        %v2234 = vlaneseq
        %v2235 = vshrl.u32 %v2234, 7
        %v2236 = vsub.s32 0, %v2235
        %v2237 = vrot.slane %v302, %v2236
        %2239 = vbcast.lane.b32.xlu0 %v2237, 256
        %v2240 = vpop.permute.xlu0 %2239
        %s2242 = sor.u32 256, 8
        %2243 = vbcast.lane.b32.xlu0 %v2237, %s2242
        %v2244 = vpop.permute.xlu0 %2243
        %s2246 = sor.u32 256, 16
        %2247 = vbcast.lane.b32.xlu0 %v2237, %s2246
        %v2248 = vpop.permute.xlu0 %2247
        %s2250 = sor.u32 256, 24
        %2251 = vbcast.lane.b32.xlu0 %v2237, %s2250
        %v2252 = vpop.permute.xlu0 %2251
        %v2253 = vlaneseq
        %v2254 = vshrl.u32 %v2253, 7
        %v2255 = vsub.s32 1, %v2254
        %v2256 = vrot.slane %v302, %v2255
        %2258 = vbcast.lane.b32.xlu0 %v2256, 256
        %v2259 = vpop.permute.xlu0 %2258
        %s2261 = sor.u32 256, 8
        %2262 = vbcast.lane.b32.xlu0 %v2256, %s2261
        %v2263 = vpop.permute.xlu0 %2262
        %s2265 = sor.u32 256, 16
        %2266 = vbcast.lane.b32.xlu0 %v2256, %s2265
        %v2267 = vpop.permute.xlu0 %2266
        %s2269 = sor.u32 256, 24
        %2270 = vbcast.lane.b32.xlu0 %v2256, %s2269
        %v2271 = vpop.permute.xlu0 %2270
        %v2272 = vlaneseq
        %v2273 = vshrl.u32 %v2272, 7
        %v2274 = vsub.s32 2, %v2273
        %v2275 = vrot.slane %v302, %v2274
        %2277 = vbcast.lane.b32.xlu0 %v2275, 256
        %v2278 = vpop.permute.xlu0 %2277
        %s2280 = sor.u32 256, 8
        %2281 = vbcast.lane.b32.xlu0 %v2275, %s2280
        %v2282 = vpop.permute.xlu0 %2281
        %s2284 = sor.u32 256, 16
        %2285 = vbcast.lane.b32.xlu0 %v2275, %s2284
        %v2286 = vpop.permute.xlu0 %2285
        %s2288 = sor.u32 256, 24
        %2289 = vbcast.lane.b32.xlu0 %v2275, %s2288
        %v2290 = vpop.permute.xlu0 %2289
        %v2291 = vlaneseq
        %v2292 = vshrl.u32 %v2291, 7
        %v2293 = vsub.s32 3, %v2292
        %v2294 = vrot.slane %v302, %v2293
        %2296 = vbcast.lane.b32.xlu0 %v2294, 256
        %v2297 = vpop.permute.xlu0 %2296
        %s2299 = sor.u32 256, 8
        %2300 = vbcast.lane.b32.xlu0 %v2294, %s2299
        %v2301 = vpop.permute.xlu0 %2300
        %s2303 = sor.u32 256, 16
        %2304 = vbcast.lane.b32.xlu0 %v2294, %s2303
        %v2305 = vpop.permute.xlu0 %2304
        %s2307 = sor.u32 256, 24
        %2308 = vbcast.lane.b32.xlu0 %v2294, %s2307
        %v2309 = vpop.permute.xlu0 %2308
        %v2310 = vlaneseq
        %v2311 = vshrl.u32 %v2310, 7
        %v2312 = vsub.s32 4, %v2311
        %v2313 = vrot.slane %v302, %v2312
        %2315 = vbcast.lane.b32.xlu0 %v2313, 256
        %v2316 = vpop.permute.xlu0 %2315
        %s2318 = sor.u32 256, 8
        %2319 = vbcast.lane.b32.xlu0 %v2313, %s2318
        %v2320 = vpop.permute.xlu0 %2319
        %s2322 = sor.u32 256, 16
        %2323 = vbcast.lane.b32.xlu0 %v2313, %s2322
        %v2324 = vpop.permute.xlu0 %2323
        %s2326 = sor.u32 256, 24
        %2327 = vbcast.lane.b32.xlu0 %v2313, %s2326
        %v2328 = vpop.permute.xlu0 %2327
        %v2329 = vlaneseq
        %v2330 = vshrl.u32 %v2329, 7
        %v2331 = vsub.s32 5, %v2330
        %v2332 = vrot.slane %v302, %v2331
        %2334 = vbcast.lane.b32.xlu0 %v2332, 256
        %v2335 = vpop.permute.xlu0 %2334
        %s2337 = sor.u32 256, 8
        %2338 = vbcast.lane.b32.xlu0 %v2332, %s2337
        %v2339 = vpop.permute.xlu0 %2338
        %s2341 = sor.u32 256, 16
        %2342 = vbcast.lane.b32.xlu0 %v2332, %s2341
        %v2343 = vpop.permute.xlu0 %2342
        %s2345 = sor.u32 256, 24
        %2346 = vbcast.lane.b32.xlu0 %v2332, %s2345
        %v2347 = vpop.permute.xlu0 %2346
        %v2348 = vlaneseq
        %v2349 = vshrl.u32 %v2348, 7
        %v2350 = vsub.s32 6, %v2349
        %v2351 = vrot.slane %v302, %v2350
        %2353 = vbcast.lane.b32.xlu0 %v2351, 256
        %v2354 = vpop.permute.xlu0 %2353
        %s2356 = sor.u32 256, 8
        %2357 = vbcast.lane.b32.xlu0 %v2351, %s2356
        %v2358 = vpop.permute.xlu0 %2357
        %s2360 = sor.u32 256, 16
        %2361 = vbcast.lane.b32.xlu0 %v2351, %s2360
        %v2362 = vpop.permute.xlu0 %2361
        %s2364 = sor.u32 256, 24
        %2365 = vbcast.lane.b32.xlu0 %v2351, %s2364
        %v2366 = vpop.permute.xlu0 %2365
        %v2367 = vlaneseq
        %v2368 = vshrl.u32 %v2367, 7
        %v2369 = vsub.s32 7, %v2368
        %v2370 = vrot.slane %v302, %v2369
        %2372 = vbcast.lane.b32.xlu0 %v2370, 256
        %v2373 = vpop.permute.xlu0 %2372
        %s2375 = sor.u32 256, 8
        %2376 = vbcast.lane.b32.xlu0 %v2370, %s2375
        %v2377 = vpop.permute.xlu0 %2376
        %s2379 = sor.u32 256, 16
        %2380 = vbcast.lane.b32.xlu0 %v2370, %s2379
        %v2381 = vpop.permute.xlu0 %2380
        %s2383 = sor.u32 256, 24
        %2384 = vbcast.lane.b32.xlu0 %v2370, %s2383
        %v2385 = vpop.permute.xlu0 %2384
        %v2450 = vmul.f32 %v2072, %v2088
        %v2451 = vmul.f32 %v2073, %v2092
        %v2452 = vmul.f32 %v2074, %v2096
        %v2453 = vmul.f32 %v2075, %v2100
        %v2454 = vmul.f32 %v2072, %v2107
        %v2455 = vmul.f32 %v2073, %v2111
        %v2456 = vmul.f32 %v2074, %v2115
        %v2457 = vmul.f32 %v2075, %v2119
        %v2458 = vmul.f32 %v2072, %v2126
        %v2459 = vmul.f32 %v2073, %v2130
        %v2460 = vmul.f32 %v2074, %v2134
        %v2461 = vmul.f32 %v2075, %v2138
        %v2462 = vmul.f32 %v2072, %v2145
        %v2463 = vmul.f32 %v2073, %v2149
        %v2464 = vmul.f32 %v2074, %v2153
        %v2465 = vmul.f32 %v2075, %v2157
        %v2466 = vmul.f32 %v2072, %v2164
        %v2467 = vmul.f32 %v2073, %v2168
        %v2468 = vmul.f32 %v2074, %v2172
        %v2469 = vmul.f32 %v2075, %v2176
        %v2470 = vmul.f32 %v2072, %v2183
        %v2471 = vmul.f32 %v2073, %v2187
        %v2472 = vmul.f32 %v2074, %v2191
        %v2473 = vmul.f32 %v2075, %v2195
        %v2474 = vmul.f32 %v2072, %v2202
        %v2475 = vmul.f32 %v2073, %v2206
        %v2476 = vmul.f32 %v2074, %v2210
        %v2477 = vmul.f32 %v2075, %v2214
        %v2478 = vmul.f32 %v2072, %v2221
        %v2479 = vmul.f32 %v2073, %v2225
        %v2480 = vmul.f32 %v2074, %v2229
        %v2481 = vmul.f32 %v2075, %v2233
        %v2482 = vmul.f32 %v2072, %v2240
        %v2483 = vmul.f32 %v2073, %v2244
        %v2484 = vmul.f32 %v2074, %v2248
        %v2485 = vmul.f32 %v2075, %v2252
        %v2486 = vmul.f32 %v2072, %v2259
        %v2487 = vmul.f32 %v2073, %v2263
        %v2488 = vmul.f32 %v2074, %v2267
        %v2489 = vmul.f32 %v2075, %v2271
        %v2490 = vmul.f32 %v2072, %v2278
        %v2491 = vmul.f32 %v2073, %v2282
        %v2492 = vmul.f32 %v2074, %v2286
        %v2493 = vmul.f32 %v2075, %v2290
        %v2494 = vmul.f32 %v2072, %v2297
        %v2495 = vmul.f32 %v2073, %v2301
        %v2496 = vmul.f32 %v2074, %v2305
        %v2497 = vmul.f32 %v2075, %v2309
        %v2498 = vmul.f32 %v2072, %v2316
        %v2499 = vmul.f32 %v2073, %v2320
        %v2500 = vmul.f32 %v2074, %v2324
        %v2501 = vmul.f32 %v2075, %v2328
        %v2502 = vmul.f32 %v2072, %v2335
        %v2503 = vmul.f32 %v2073, %v2339
        %v2504 = vmul.f32 %v2074, %v2343
        %v2505 = vmul.f32 %v2075, %v2347
        %v2506 = vmul.f32 %v2072, %v2354
        %v2507 = vmul.f32 %v2073, %v2358
        %v2508 = vmul.f32 %v2074, %v2362
        %v2509 = vmul.f32 %v2075, %v2366
        %v2510 = vmul.f32 %v2072, %v2373
        %v2511 = vmul.f32 %v2073, %v2377
        %v2512 = vmul.f32 %v2074, %v2381
        %v2513 = vmul.f32 %v2075, %v2385
        %v2514 = vmul.f32 %v2076, %v2088
        %v2515 = vmul.f32 %v2077, %v2092
        %v2516 = vmul.f32 %v2078, %v2096
        %v2517 = vmul.f32 %v2079, %v2100
        %v2518 = vmul.f32 %v2076, %v2107
        %v2519 = vmul.f32 %v2077, %v2111
        %v2520 = vmul.f32 %v2078, %v2115
        %v2521 = vmul.f32 %v2079, %v2119
        %v2522 = vmul.f32 %v2076, %v2126
        %v2523 = vmul.f32 %v2077, %v2130
        %v2524 = vmul.f32 %v2078, %v2134
        %v2525 = vmul.f32 %v2079, %v2138
        %v2526 = vmul.f32 %v2076, %v2145
        %v2527 = vmul.f32 %v2077, %v2149
        %v2528 = vmul.f32 %v2078, %v2153
        %v2529 = vmul.f32 %v2079, %v2157
        %v2530 = vmul.f32 %v2076, %v2164
        %v2531 = vmul.f32 %v2077, %v2168
        %v2532 = vmul.f32 %v2078, %v2172
        %v2533 = vmul.f32 %v2079, %v2176
        %v2534 = vmul.f32 %v2076, %v2183
        %v2535 = vmul.f32 %v2077, %v2187
        %v2536 = vmul.f32 %v2078, %v2191
        %v2537 = vmul.f32 %v2079, %v2195
        %v2538 = vmul.f32 %v2076, %v2202
        %v2539 = vmul.f32 %v2077, %v2206
        %v2540 = vmul.f32 %v2078, %v2210
        %v2541 = vmul.f32 %v2079, %v2214
        %v2542 = vmul.f32 %v2076, %v2221
        %v2543 = vmul.f32 %v2077, %v2225
        %v2544 = vmul.f32 %v2078, %v2229
        %v2545 = vmul.f32 %v2079, %v2233
        %v2546 = vmul.f32 %v2076, %v2240
        %v2547 = vmul.f32 %v2077, %v2244
        %v2548 = vmul.f32 %v2078, %v2248
        %v2549 = vmul.f32 %v2079, %v2252
        %v2550 = vmul.f32 %v2076, %v2259
        %v2551 = vmul.f32 %v2077, %v2263
        %v2552 = vmul.f32 %v2078, %v2267
        %v2553 = vmul.f32 %v2079, %v2271
        %v2554 = vmul.f32 %v2076, %v2278
        %v2555 = vmul.f32 %v2077, %v2282
        %v2556 = vmul.f32 %v2078, %v2286
        %v2557 = vmul.f32 %v2079, %v2290
        %v2558 = vmul.f32 %v2076, %v2297
        %v2559 = vmul.f32 %v2077, %v2301
        %v2560 = vmul.f32 %v2078, %v2305
        %v2561 = vmul.f32 %v2079, %v2309
        %v2562 = vmul.f32 %v2076, %v2316
        %v2563 = vmul.f32 %v2077, %v2320
        %v2564 = vmul.f32 %v2078, %v2324
        %v2565 = vmul.f32 %v2079, %v2328
        %v2566 = vmul.f32 %v2076, %v2335
        %v2567 = vmul.f32 %v2077, %v2339
        %v2568 = vmul.f32 %v2078, %v2343
        %v2569 = vmul.f32 %v2079, %v2347
        %v2570 = vmul.f32 %v2076, %v2354
        %v2571 = vmul.f32 %v2077, %v2358
        %v2572 = vmul.f32 %v2078, %v2362
        %v2573 = vmul.f32 %v2079, %v2366
        %v2574 = vmul.f32 %v2076, %v2373
        %v2575 = vmul.f32 %v2077, %v2377
        %v2576 = vmul.f32 %v2078, %v2381
        %v2577 = vmul.f32 %v2079, %v2385
        %2706 = vset.pattern.permute.xlu0 0
        %2707 = vperm.xlu0 %2706, %v2450
        %v2708 = vpop.permute.xlu0 %2707
        %2709 = vset.pattern.permute.xlu0 0
        %2710 = vperm.xlu0 %2709, %v2451
        %v2711 = vpop.permute.xlu0 %2710
        %2712 = vset.pattern.permute.xlu0 0
        %2713 = vperm.xlu0 %2712, %v2452
        %v2714 = vpop.permute.xlu0 %2713
        %2715 = vset.pattern.permute.xlu0 0
        %2716 = vperm.xlu0 %2715, %v2453
        %v2717 = vpop.permute.xlu0 %2716
        %2718 = vset.pattern.permute.xlu0 0
        %2719 = vperm.xlu0 %2718, %v2454
        %v2720 = vpop.permute.xlu0 %2719
        %2721 = vset.pattern.permute.xlu0 0
        %2722 = vperm.xlu0 %2721, %v2455
        %v2723 = vpop.permute.xlu0 %2722
        %2724 = vset.pattern.permute.xlu0 0
        %2725 = vperm.xlu0 %2724, %v2456
        %v2726 = vpop.permute.xlu0 %2725
        %2727 = vset.pattern.permute.xlu0 0
        %2728 = vperm.xlu0 %2727, %v2457
        %v2729 = vpop.permute.xlu0 %2728
        %2730 = vset.pattern.permute.xlu0 0
        %2731 = vperm.xlu0 %2730, %v2458
        %v2732 = vpop.permute.xlu0 %2731
        %2733 = vset.pattern.permute.xlu0 0
        %2734 = vperm.xlu0 %2733, %v2459
        %v2735 = vpop.permute.xlu0 %2734
        %2736 = vset.pattern.permute.xlu0 0
        %2737 = vperm.xlu0 %2736, %v2460
        %v2738 = vpop.permute.xlu0 %2737
        %2739 = vset.pattern.permute.xlu0 0
        %2740 = vperm.xlu0 %2739, %v2461
        %v2741 = vpop.permute.xlu0 %2740
        %2742 = vset.pattern.permute.xlu0 0
        %2743 = vperm.xlu0 %2742, %v2462
        %v2744 = vpop.permute.xlu0 %2743
        %2745 = vset.pattern.permute.xlu0 0
        %2746 = vperm.xlu0 %2745, %v2463
        %v2747 = vpop.permute.xlu0 %2746
        %2748 = vset.pattern.permute.xlu0 0
        %2749 = vperm.xlu0 %2748, %v2464
        %v2750 = vpop.permute.xlu0 %2749
        %2751 = vset.pattern.permute.xlu0 0
        %2752 = vperm.xlu0 %2751, %v2465
        %v2753 = vpop.permute.xlu0 %2752
        %2754 = vset.pattern.permute.xlu0 0
        %2755 = vperm.xlu0 %2754, %v2466
        %v2756 = vpop.permute.xlu0 %2755
        %2757 = vset.pattern.permute.xlu0 0
        %2758 = vperm.xlu0 %2757, %v2467
        %v2759 = vpop.permute.xlu0 %2758
        %2760 = vset.pattern.permute.xlu0 0
        %2761 = vperm.xlu0 %2760, %v2468
        %v2762 = vpop.permute.xlu0 %2761
        %2763 = vset.pattern.permute.xlu0 0
        %2764 = vperm.xlu0 %2763, %v2469
        %v2765 = vpop.permute.xlu0 %2764
        %2766 = vset.pattern.permute.xlu0 0
        %2767 = vperm.xlu0 %2766, %v2470
        %v2768 = vpop.permute.xlu0 %2767
        %2769 = vset.pattern.permute.xlu0 0
        %2770 = vperm.xlu0 %2769, %v2471
        %v2771 = vpop.permute.xlu0 %2770
        %2772 = vset.pattern.permute.xlu0 0
        %2773 = vperm.xlu0 %2772, %v2472
        %v2774 = vpop.permute.xlu0 %2773
        %2775 = vset.pattern.permute.xlu0 0
        %2776 = vperm.xlu0 %2775, %v2473
        %v2777 = vpop.permute.xlu0 %2776
        %2778 = vset.pattern.permute.xlu0 0
        %2779 = vperm.xlu0 %2778, %v2474
        %v2780 = vpop.permute.xlu0 %2779
        %2781 = vset.pattern.permute.xlu0 0
        %2782 = vperm.xlu0 %2781, %v2475
        %v2783 = vpop.permute.xlu0 %2782
        %2784 = vset.pattern.permute.xlu0 0
        %2785 = vperm.xlu0 %2784, %v2476
        %v2786 = vpop.permute.xlu0 %2785
        %2787 = vset.pattern.permute.xlu0 0
        %2788 = vperm.xlu0 %2787, %v2477
        %v2789 = vpop.permute.xlu0 %2788
        %2790 = vset.pattern.permute.xlu0 0
        %2791 = vperm.xlu0 %2790, %v2478
        %v2792 = vpop.permute.xlu0 %2791
        %2793 = vset.pattern.permute.xlu0 0
        %2794 = vperm.xlu0 %2793, %v2479
        %v2795 = vpop.permute.xlu0 %2794
        %2796 = vset.pattern.permute.xlu0 0
        %2797 = vperm.xlu0 %2796, %v2480
        %v2798 = vpop.permute.xlu0 %2797
        %2799 = vset.pattern.permute.xlu0 0
        %2800 = vperm.xlu0 %2799, %v2481
        %v2801 = vpop.permute.xlu0 %2800
        %2802 = vset.pattern.permute.xlu0 0
        %2803 = vperm.xlu0 %2802, %v2482
        %v2804 = vpop.permute.xlu0 %2803
        %2805 = vset.pattern.permute.xlu0 0
        %2806 = vperm.xlu0 %2805, %v2483
        %v2807 = vpop.permute.xlu0 %2806
        %2808 = vset.pattern.permute.xlu0 0
        %2809 = vperm.xlu0 %2808, %v2484
        %v2810 = vpop.permute.xlu0 %2809
        %2811 = vset.pattern.permute.xlu0 0
        %2812 = vperm.xlu0 %2811, %v2485
        %v2813 = vpop.permute.xlu0 %2812
        %2814 = vset.pattern.permute.xlu0 0
        %2815 = vperm.xlu0 %2814, %v2486
        %v2816 = vpop.permute.xlu0 %2815
        %2817 = vset.pattern.permute.xlu0 0
        %2818 = vperm.xlu0 %2817, %v2487
        %v2819 = vpop.permute.xlu0 %2818
        %2820 = vset.pattern.permute.xlu0 0
        %2821 = vperm.xlu0 %2820, %v2488
        %v2822 = vpop.permute.xlu0 %2821
        %2823 = vset.pattern.permute.xlu0 0
        %2824 = vperm.xlu0 %2823, %v2489
        %v2825 = vpop.permute.xlu0 %2824
        %2826 = vset.pattern.permute.xlu0 0
        %2827 = vperm.xlu0 %2826, %v2490
        %v2828 = vpop.permute.xlu0 %2827
        %2829 = vset.pattern.permute.xlu0 0
        %2830 = vperm.xlu0 %2829, %v2491
        %v2831 = vpop.permute.xlu0 %2830
        %2832 = vset.pattern.permute.xlu0 0
        %2833 = vperm.xlu0 %2832, %v2492
        %v2834 = vpop.permute.xlu0 %2833
        %2835 = vset.pattern.permute.xlu0 0
        %2836 = vperm.xlu0 %2835, %v2493
        %v2837 = vpop.permute.xlu0 %2836
        %2838 = vset.pattern.permute.xlu0 0
        %2839 = vperm.xlu0 %2838, %v2494
        %v2840 = vpop.permute.xlu0 %2839
        %2841 = vset.pattern.permute.xlu0 0
        %2842 = vperm.xlu0 %2841, %v2495
        %v2843 = vpop.permute.xlu0 %2842
        %2844 = vset.pattern.permute.xlu0 0
        %2845 = vperm.xlu0 %2844, %v2496
        %v2846 = vpop.permute.xlu0 %2845
        %2847 = vset.pattern.permute.xlu0 0
        %2848 = vperm.xlu0 %2847, %v2497
        %v2849 = vpop.permute.xlu0 %2848
        %2850 = vset.pattern.permute.xlu0 0
        %2851 = vperm.xlu0 %2850, %v2498
        %v2852 = vpop.permute.xlu0 %2851
        %2853 = vset.pattern.permute.xlu0 0
        %2854 = vperm.xlu0 %2853, %v2499
        %v2855 = vpop.permute.xlu0 %2854
        %2856 = vset.pattern.permute.xlu0 0
        %2857 = vperm.xlu0 %2856, %v2500
        %v2858 = vpop.permute.xlu0 %2857
        %2859 = vset.pattern.permute.xlu0 0
        %2860 = vperm.xlu0 %2859, %v2501
        %v2861 = vpop.permute.xlu0 %2860
        %2862 = vset.pattern.permute.xlu0 0
        %2863 = vperm.xlu0 %2862, %v2502
        %v2864 = vpop.permute.xlu0 %2863
        %2865 = vset.pattern.permute.xlu0 0
        %2866 = vperm.xlu0 %2865, %v2503
        %v2867 = vpop.permute.xlu0 %2866
        %2868 = vset.pattern.permute.xlu0 0
        %2869 = vperm.xlu0 %2868, %v2504
        %v2870 = vpop.permute.xlu0 %2869
        %2871 = vset.pattern.permute.xlu0 0
        %2872 = vperm.xlu0 %2871, %v2505
        %v2873 = vpop.permute.xlu0 %2872
        %2874 = vset.pattern.permute.xlu0 0
        %2875 = vperm.xlu0 %2874, %v2506
        %v2876 = vpop.permute.xlu0 %2875
        %2877 = vset.pattern.permute.xlu0 0
        %2878 = vperm.xlu0 %2877, %v2507
        %v2879 = vpop.permute.xlu0 %2878
        %2880 = vset.pattern.permute.xlu0 0
        %2881 = vperm.xlu0 %2880, %v2508
        %v2882 = vpop.permute.xlu0 %2881
        %2883 = vset.pattern.permute.xlu0 0
        %2884 = vperm.xlu0 %2883, %v2509
        %v2885 = vpop.permute.xlu0 %2884
        %2886 = vset.pattern.permute.xlu0 0
        %2887 = vperm.xlu0 %2886, %v2510
        %v2888 = vpop.permute.xlu0 %2887
        %2889 = vset.pattern.permute.xlu0 0
        %2890 = vperm.xlu0 %2889, %v2511
        %v2891 = vpop.permute.xlu0 %2890
        %2892 = vset.pattern.permute.xlu0 0
        %2893 = vperm.xlu0 %2892, %v2512
        %v2894 = vpop.permute.xlu0 %2893
        %2895 = vset.pattern.permute.xlu0 0
        %2896 = vperm.xlu0 %2895, %v2513
        %v2897 = vpop.permute.xlu0 %2896
        %2898 = vset.pattern.permute.xlu0 0
        %2899 = vperm.xlu0 %2898, %v2514
        %v2900 = vpop.permute.xlu0 %2899
        %2901 = vset.pattern.permute.xlu0 0
        %2902 = vperm.xlu0 %2901, %v2515
        %v2903 = vpop.permute.xlu0 %2902
        %2904 = vset.pattern.permute.xlu0 0
        %2905 = vperm.xlu0 %2904, %v2516
        %v2906 = vpop.permute.xlu0 %2905
        %2907 = vset.pattern.permute.xlu0 0
        %2908 = vperm.xlu0 %2907, %v2517
        %v2909 = vpop.permute.xlu0 %2908
        %2910 = vset.pattern.permute.xlu0 0
        %2911 = vperm.xlu0 %2910, %v2518
        %v2912 = vpop.permute.xlu0 %2911
        %2913 = vset.pattern.permute.xlu0 0
        %2914 = vperm.xlu0 %2913, %v2519
        %v2915 = vpop.permute.xlu0 %2914
        %2916 = vset.pattern.permute.xlu0 0
        %2917 = vperm.xlu0 %2916, %v2520
        %v2918 = vpop.permute.xlu0 %2917
        %2919 = vset.pattern.permute.xlu0 0
        %2920 = vperm.xlu0 %2919, %v2521
        %v2921 = vpop.permute.xlu0 %2920
        %2922 = vset.pattern.permute.xlu0 0
        %2923 = vperm.xlu0 %2922, %v2522
        %v2924 = vpop.permute.xlu0 %2923
        %2925 = vset.pattern.permute.xlu0 0
        %2926 = vperm.xlu0 %2925, %v2523
        %v2927 = vpop.permute.xlu0 %2926
        %2928 = vset.pattern.permute.xlu0 0
        %2929 = vperm.xlu0 %2928, %v2524
        %v2930 = vpop.permute.xlu0 %2929
        %2931 = vset.pattern.permute.xlu0 0
        %2932 = vperm.xlu0 %2931, %v2525
        %v2933 = vpop.permute.xlu0 %2932
        %2934 = vset.pattern.permute.xlu0 0
        %2935 = vperm.xlu0 %2934, %v2526
        %v2936 = vpop.permute.xlu0 %2935
        %2937 = vset.pattern.permute.xlu0 0
        %2938 = vperm.xlu0 %2937, %v2527
        %v2939 = vpop.permute.xlu0 %2938
        %2940 = vset.pattern.permute.xlu0 0
        %2941 = vperm.xlu0 %2940, %v2528
        %v2942 = vpop.permute.xlu0 %2941
        %2943 = vset.pattern.permute.xlu0 0
        %2944 = vperm.xlu0 %2943, %v2529
        %v2945 = vpop.permute.xlu0 %2944
        %2946 = vset.pattern.permute.xlu0 0
        %2947 = vperm.xlu0 %2946, %v2530
        %v2948 = vpop.permute.xlu0 %2947
        %2949 = vset.pattern.permute.xlu0 0
        %2950 = vperm.xlu0 %2949, %v2531
        %v2951 = vpop.permute.xlu0 %2950
        %2952 = vset.pattern.permute.xlu0 0
        %2953 = vperm.xlu0 %2952, %v2532
        %v2954 = vpop.permute.xlu0 %2953
        %2955 = vset.pattern.permute.xlu0 0
        %2956 = vperm.xlu0 %2955, %v2533
        %v2957 = vpop.permute.xlu0 %2956
        %2958 = vset.pattern.permute.xlu0 0
        %2959 = vperm.xlu0 %2958, %v2534
        %v2960 = vpop.permute.xlu0 %2959
        %2961 = vset.pattern.permute.xlu0 0
        %2962 = vperm.xlu0 %2961, %v2535
        %v2963 = vpop.permute.xlu0 %2962
        %2964 = vset.pattern.permute.xlu0 0
        %2965 = vperm.xlu0 %2964, %v2536
        %v2966 = vpop.permute.xlu0 %2965
        %2967 = vset.pattern.permute.xlu0 0
        %2968 = vperm.xlu0 %2967, %v2537
        %v2969 = vpop.permute.xlu0 %2968
        %2970 = vset.pattern.permute.xlu0 0
        %2971 = vperm.xlu0 %2970, %v2538
        %v2972 = vpop.permute.xlu0 %2971
        %2973 = vset.pattern.permute.xlu0 0
        %2974 = vperm.xlu0 %2973, %v2539
        %v2975 = vpop.permute.xlu0 %2974
        %2976 = vset.pattern.permute.xlu0 0
        %2977 = vperm.xlu0 %2976, %v2540
        %v2978 = vpop.permute.xlu0 %2977
        %2979 = vset.pattern.permute.xlu0 0
        %2980 = vperm.xlu0 %2979, %v2541
        %v2981 = vpop.permute.xlu0 %2980
        %2982 = vset.pattern.permute.xlu0 0
        %2983 = vperm.xlu0 %2982, %v2542
        %v2984 = vpop.permute.xlu0 %2983
        %2985 = vset.pattern.permute.xlu0 0
        %2986 = vperm.xlu0 %2985, %v2543
        %v2987 = vpop.permute.xlu0 %2986
        %2988 = vset.pattern.permute.xlu0 0
        %2989 = vperm.xlu0 %2988, %v2544
        %v2990 = vpop.permute.xlu0 %2989
        %2991 = vset.pattern.permute.xlu0 0
        %2992 = vperm.xlu0 %2991, %v2545
        %v2993 = vpop.permute.xlu0 %2992
        %2994 = vset.pattern.permute.xlu0 0
        %2995 = vperm.xlu0 %2994, %v2546
        %v2996 = vpop.permute.xlu0 %2995
        %2997 = vset.pattern.permute.xlu0 0
        %2998 = vperm.xlu0 %2997, %v2547
        %v2999 = vpop.permute.xlu0 %2998
        %3000 = vset.pattern.permute.xlu0 0
        %3001 = vperm.xlu0 %3000, %v2548
        %v3002 = vpop.permute.xlu0 %3001
        %3003 = vset.pattern.permute.xlu0 0
        %3004 = vperm.xlu0 %3003, %v2549
        %v3005 = vpop.permute.xlu0 %3004
        %3006 = vset.pattern.permute.xlu0 0
        %3007 = vperm.xlu0 %3006, %v2550
        %v3008 = vpop.permute.xlu0 %3007
        %3009 = vset.pattern.permute.xlu0 0
        %3010 = vperm.xlu0 %3009, %v2551
        %v3011 = vpop.permute.xlu0 %3010
        %3012 = vset.pattern.permute.xlu0 0
        %3013 = vperm.xlu0 %3012, %v2552
        %v3014 = vpop.permute.xlu0 %3013
        %3015 = vset.pattern.permute.xlu0 0
        %3016 = vperm.xlu0 %3015, %v2553
        %v3017 = vpop.permute.xlu0 %3016
        %3018 = vset.pattern.permute.xlu0 0
        %3019 = vperm.xlu0 %3018, %v2554
        %v3020 = vpop.permute.xlu0 %3019
        %3021 = vset.pattern.permute.xlu0 0
        %3022 = vperm.xlu0 %3021, %v2555
        %v3023 = vpop.permute.xlu0 %3022
        %3024 = vset.pattern.permute.xlu0 0
        %3025 = vperm.xlu0 %3024, %v2556
        %v3026 = vpop.permute.xlu0 %3025
        %3027 = vset.pattern.permute.xlu0 0
        %3028 = vperm.xlu0 %3027, %v2557
        %v3029 = vpop.permute.xlu0 %3028
        %3030 = vset.pattern.permute.xlu0 0
        %3031 = vperm.xlu0 %3030, %v2558
        %v3032 = vpop.permute.xlu0 %3031
        %3033 = vset.pattern.permute.xlu0 0
        %3034 = vperm.xlu0 %3033, %v2559
        %v3035 = vpop.permute.xlu0 %3034
        %3036 = vset.pattern.permute.xlu0 0
        %3037 = vperm.xlu0 %3036, %v2560
        %v3038 = vpop.permute.xlu0 %3037
        %3039 = vset.pattern.permute.xlu0 0
        %3040 = vperm.xlu0 %3039, %v2561
        %v3041 = vpop.permute.xlu0 %3040
        %3042 = vset.pattern.permute.xlu0 0
        %3043 = vperm.xlu0 %3042, %v2562
        %v3044 = vpop.permute.xlu0 %3043
        %3045 = vset.pattern.permute.xlu0 0
        %3046 = vperm.xlu0 %3045, %v2563
        %v3047 = vpop.permute.xlu0 %3046
        %3048 = vset.pattern.permute.xlu0 0
        %3049 = vperm.xlu0 %3048, %v2564
        %v3050 = vpop.permute.xlu0 %3049
        %3051 = vset.pattern.permute.xlu0 0
        %3052 = vperm.xlu0 %3051, %v2565
        %v3053 = vpop.permute.xlu0 %3052
        %3054 = vset.pattern.permute.xlu0 0
        %3055 = vperm.xlu0 %3054, %v2566
        %v3056 = vpop.permute.xlu0 %3055
        %3057 = vset.pattern.permute.xlu0 0
        %3058 = vperm.xlu0 %3057, %v2567
        %v3059 = vpop.permute.xlu0 %3058
        %3060 = vset.pattern.permute.xlu0 0
        %3061 = vperm.xlu0 %3060, %v2568
        %v3062 = vpop.permute.xlu0 %3061
        %3063 = vset.pattern.permute.xlu0 0
        %3064 = vperm.xlu0 %3063, %v2569
        %v3065 = vpop.permute.xlu0 %3064
        %3066 = vset.pattern.permute.xlu0 0
        %3067 = vperm.xlu0 %3066, %v2570
        %v3068 = vpop.permute.xlu0 %3067
        %3069 = vset.pattern.permute.xlu0 0
        %3070 = vperm.xlu0 %3069, %v2571
        %v3071 = vpop.permute.xlu0 %3070
        %3072 = vset.pattern.permute.xlu0 0
        %3073 = vperm.xlu0 %3072, %v2572
        %v3074 = vpop.permute.xlu0 %3073
        %3075 = vset.pattern.permute.xlu0 0
        %3076 = vperm.xlu0 %3075, %v2573
        %v3077 = vpop.permute.xlu0 %3076
        %3078 = vset.pattern.permute.xlu0 0
        %3079 = vperm.xlu0 %3078, %v2574
        %v3080 = vpop.permute.xlu0 %3079
        %3081 = vset.pattern.permute.xlu0 0
        %3082 = vperm.xlu0 %3081, %v2575
        %v3083 = vpop.permute.xlu0 %3082
        %3084 = vset.pattern.permute.xlu0 0
        %3085 = vperm.xlu0 %3084, %v2576
        %v3086 = vpop.permute.xlu0 %3085
        %3087 = vset.pattern.permute.xlu0 0
        %3088 = vperm.xlu0 %3087, %v2577
        %v3089 = vpop.permute.xlu0 %3088
        %v3090 = vlaneseq
        %v3091 = vshrl.u32 %v3090, 7
        %v3092 = vsub.s32 %v1365, %v3091
        %v3093 = vrot.slane %v2708, %v3092
        %v3094 = vlaneseq
        %v3095 = vshrl.u32 %v3094, 7
        %v3096 = vsub.s32 %v1370, %v3095
        %v3097 = vrot.slane %v2711, %v3096
        %v3098 = vsel %vm1375, %v3097, %v3093
        %v3099 = vadd.s32 %v1365, 4294967280
        %v3100 = vlaneseq
        %v3101 = vshrl.u32 %v3100, 7
        %v3102 = vsub.s32 %v3099, %v3101
        %v3103 = vrot.slane %v2714, %v3102
        %vm3104 = vcmask 195712
        %v3105 = vsel %vm3104, %v3103, %v3098
        %v3106 = vadd.s32 %v1365, 4294967272
        %v3107 = vlaneseq
        %v3108 = vshrl.u32 %v3107, 7
        %v3109 = vsub.s32 %v3106, %v3108
        %v3110 = vrot.slane %v2717, %v3109
        %vm3111 = vcmask 261312
        %v3112 = vsel %vm3111, %v3110, %v3105
        %v3113 = vlaneseq
        %v3114 = vshrl.u32 %v3113, 7
        %v3115 = vsub.s32 %v1365, %v3114
        %v3116 = vrot.slane %v2720, %v3115
        %v3117 = vlaneseq
        %v3118 = vshrl.u32 %v3117, 7
        %v3119 = vsub.s32 %v1370, %v3118
        %v3120 = vrot.slane %v2723, %v3119
        %v3121 = vsel %vm1375, %v3120, %v3116
        %v3122 = vlaneseq
        %v3123 = vshrl.u32 %v3122, 7
        %v3124 = vsub.s32 %v3099, %v3123
        %v3125 = vrot.slane %v2726, %v3124
        %v3126 = vsel %vm3104, %v3125, %v3121
        %v3127 = vlaneseq
        %v3128 = vshrl.u32 %v3127, 7
        %v3129 = vsub.s32 %v3106, %v3128
        %v3130 = vrot.slane %v2729, %v3129
        %v3131 = vsel %vm3111, %v3130, %v3126
        %v3132 = vlaneseq
        %v3133 = vshrl.u32 %v3132, 7
        %v3134 = vsub.s32 %v1365, %v3133
        %v3135 = vrot.slane %v2732, %v3134
        %v3136 = vlaneseq
        %v3137 = vshrl.u32 %v3136, 7
        %v3138 = vsub.s32 %v1370, %v3137
        %v3139 = vrot.slane %v2735, %v3138
        %v3140 = vsel %vm1375, %v3139, %v3135
        %v3141 = vlaneseq
        %v3142 = vshrl.u32 %v3141, 7
        %v3143 = vsub.s32 %v3099, %v3142
        %v3144 = vrot.slane %v2738, %v3143
        %v3145 = vsel %vm3104, %v3144, %v3140
        %v3146 = vlaneseq
        %v3147 = vshrl.u32 %v3146, 7
        %v3148 = vsub.s32 %v3106, %v3147
        %v3149 = vrot.slane %v2741, %v3148
        %v3150 = vsel %vm3111, %v3149, %v3145
        %v3151 = vlaneseq
        %v3152 = vshrl.u32 %v3151, 7
        %v3153 = vsub.s32 %v1365, %v3152
        %v3154 = vrot.slane %v2744, %v3153
        %v3155 = vlaneseq
        %v3156 = vshrl.u32 %v3155, 7
        %v3157 = vsub.s32 %v1370, %v3156
        %v3158 = vrot.slane %v2747, %v3157
        %v3159 = vsel %vm1375, %v3158, %v3154
        %v3160 = vlaneseq
        %v3161 = vshrl.u32 %v3160, 7
        %v3162 = vsub.s32 %v3099, %v3161
        %v3163 = vrot.slane %v2750, %v3162
        %v3164 = vsel %vm3104, %v3163, %v3159
        %v3165 = vlaneseq
        %v3166 = vshrl.u32 %v3165, 7
        %v3167 = vsub.s32 %v3106, %v3166
        %v3168 = vrot.slane %v2753, %v3167
        %v3169 = vsel %vm3111, %v3168, %v3164
        %v3170 = vlaneseq
        %v3171 = vshrl.u32 %v3170, 7
        %v3172 = vsub.s32 %v1365, %v3171
        %v3173 = vrot.slane %v2756, %v3172
        %v3174 = vlaneseq
        %v3175 = vshrl.u32 %v3174, 7
        %v3176 = vsub.s32 %v1370, %v3175
        %v3177 = vrot.slane %v2759, %v3176
        %v3178 = vsel %vm1375, %v3177, %v3173
        %v3179 = vlaneseq
        %v3180 = vshrl.u32 %v3179, 7
        %v3181 = vsub.s32 %v3099, %v3180
        %v3182 = vrot.slane %v2762, %v3181
        %v3183 = vsel %vm3104, %v3182, %v3178
        %v3184 = vlaneseq
        %v3185 = vshrl.u32 %v3184, 7
        %v3186 = vsub.s32 %v3106, %v3185
        %v3187 = vrot.slane %v2765, %v3186
        %v3188 = vsel %vm3111, %v3187, %v3183
        %v3189 = vlaneseq
        %v3190 = vshrl.u32 %v3189, 7
        %v3191 = vsub.s32 %v1365, %v3190
        %v3192 = vrot.slane %v2768, %v3191
        %v3193 = vlaneseq
        %v3194 = vshrl.u32 %v3193, 7
        %v3195 = vsub.s32 %v1370, %v3194
        %v3196 = vrot.slane %v2771, %v3195
        %v3197 = vsel %vm1375, %v3196, %v3192
        %v3198 = vlaneseq
        %v3199 = vshrl.u32 %v3198, 7
        %v3200 = vsub.s32 %v3099, %v3199
        %v3201 = vrot.slane %v2774, %v3200
        %v3202 = vsel %vm3104, %v3201, %v3197
        %v3203 = vlaneseq
        %v3204 = vshrl.u32 %v3203, 7
        %v3205 = vsub.s32 %v3106, %v3204
        %v3206 = vrot.slane %v2777, %v3205
        %v3207 = vsel %vm3111, %v3206, %v3202
        %v3208 = vlaneseq
        %v3209 = vshrl.u32 %v3208, 7
        %v3210 = vsub.s32 %v1365, %v3209
        %v3211 = vrot.slane %v2780, %v3210
        %v3212 = vlaneseq
        %v3213 = vshrl.u32 %v3212, 7
        %v3214 = vsub.s32 %v1370, %v3213
        %v3215 = vrot.slane %v2783, %v3214
        %v3216 = vsel %vm1375, %v3215, %v3211
        %v3217 = vlaneseq
        %v3218 = vshrl.u32 %v3217, 7
        %v3219 = vsub.s32 %v3099, %v3218
        %v3220 = vrot.slane %v2786, %v3219
        %v3221 = vsel %vm3104, %v3220, %v3216
        %v3222 = vlaneseq
        %v3223 = vshrl.u32 %v3222, 7
        %v3224 = vsub.s32 %v3106, %v3223
        %v3225 = vrot.slane %v2789, %v3224
        %v3226 = vsel %vm3111, %v3225, %v3221
        %v3227 = vlaneseq
        %v3228 = vshrl.u32 %v3227, 7
        %v3229 = vsub.s32 %v1365, %v3228
        %v3230 = vrot.slane %v2792, %v3229
        %v3231 = vlaneseq
        %v3232 = vshrl.u32 %v3231, 7
        %v3233 = vsub.s32 %v1370, %v3232
        %v3234 = vrot.slane %v2795, %v3233
        %v3235 = vsel %vm1375, %v3234, %v3230
        %v3236 = vlaneseq
        %v3237 = vshrl.u32 %v3236, 7
        %v3238 = vsub.s32 %v3099, %v3237
        %v3239 = vrot.slane %v2798, %v3238
        %v3240 = vsel %vm3104, %v3239, %v3235
        %v3241 = vlaneseq
        %v3242 = vshrl.u32 %v3241, 7
        %v3243 = vsub.s32 %v3106, %v3242
        %v3244 = vrot.slane %v2801, %v3243
        %v3245 = vsel %vm3111, %v3244, %v3240
        %v3246 = vlaneseq
        %v3247 = vshrl.u32 %v3246, 7
        %v3248 = vsub.s32 %v1365, %v3247
        %v3249 = vrot.slane %v2804, %v3248
        %v3250 = vlaneseq
        %v3251 = vshrl.u32 %v3250, 7
        %v3252 = vsub.s32 %v1370, %v3251
        %v3253 = vrot.slane %v2807, %v3252
        %v3254 = vsel %vm1375, %v3253, %v3249
        %v3255 = vlaneseq
        %v3256 = vshrl.u32 %v3255, 7
        %v3257 = vsub.s32 %v3099, %v3256
        %v3258 = vrot.slane %v2810, %v3257
        %v3259 = vsel %vm3104, %v3258, %v3254
        %v3260 = vlaneseq
        %v3261 = vshrl.u32 %v3260, 7
        %v3262 = vsub.s32 %v3106, %v3261
        %v3263 = vrot.slane %v2813, %v3262
        %v3264 = vsel %vm3111, %v3263, %v3259
        %v3265 = vlaneseq
        %v3266 = vshrl.u32 %v3265, 7
        %v3267 = vsub.s32 %v1365, %v3266
        %v3268 = vrot.slane %v2816, %v3267
        %v3269 = vlaneseq
        %v3270 = vshrl.u32 %v3269, 7
        %v3271 = vsub.s32 %v1370, %v3270
        %v3272 = vrot.slane %v2819, %v3271
        %v3273 = vsel %vm1375, %v3272, %v3268
        %v3274 = vlaneseq
        %v3275 = vshrl.u32 %v3274, 7
        %v3276 = vsub.s32 %v3099, %v3275
        %v3277 = vrot.slane %v2822, %v3276
        %v3278 = vsel %vm3104, %v3277, %v3273
        %v3279 = vlaneseq
        %v3280 = vshrl.u32 %v3279, 7
        %v3281 = vsub.s32 %v3106, %v3280
        %v3282 = vrot.slane %v2825, %v3281
        %v3283 = vsel %vm3111, %v3282, %v3278
        %v3284 = vlaneseq
        %v3285 = vshrl.u32 %v3284, 7
        %v3286 = vsub.s32 %v1365, %v3285
        %v3287 = vrot.slane %v2828, %v3286
        %v3288 = vlaneseq
        %v3289 = vshrl.u32 %v3288, 7
        %v3290 = vsub.s32 %v1370, %v3289
        %v3291 = vrot.slane %v2831, %v3290
        %v3292 = vsel %vm1375, %v3291, %v3287
        %v3293 = vlaneseq
        %v3294 = vshrl.u32 %v3293, 7
        %v3295 = vsub.s32 %v3099, %v3294
        %v3296 = vrot.slane %v2834, %v3295
        %v3297 = vsel %vm3104, %v3296, %v3292
        %v3298 = vlaneseq
        %v3299 = vshrl.u32 %v3298, 7
        %v3300 = vsub.s32 %v3106, %v3299
        %v3301 = vrot.slane %v2837, %v3300
        %v3302 = vsel %vm3111, %v3301, %v3297
        %v3303 = vlaneseq
        %v3304 = vshrl.u32 %v3303, 7
        %v3305 = vsub.s32 %v1365, %v3304
        %v3306 = vrot.slane %v2840, %v3305
        %v3307 = vlaneseq
        %v3308 = vshrl.u32 %v3307, 7
        %v3309 = vsub.s32 %v1370, %v3308
        %v3310 = vrot.slane %v2843, %v3309
        %v3311 = vsel %vm1375, %v3310, %v3306
        %v3312 = vlaneseq
        %v3313 = vshrl.u32 %v3312, 7
        %v3314 = vsub.s32 %v3099, %v3313
        %v3315 = vrot.slane %v2846, %v3314
        %v3316 = vsel %vm3104, %v3315, %v3311
        %v3317 = vlaneseq
        %v3318 = vshrl.u32 %v3317, 7
        %v3319 = vsub.s32 %v3106, %v3318
        %v3320 = vrot.slane %v2849, %v3319
        %v3321 = vsel %vm3111, %v3320, %v3316
        %v3322 = vlaneseq
        %v3323 = vshrl.u32 %v3322, 7
        %v3324 = vsub.s32 %v1365, %v3323
        %v3325 = vrot.slane %v2852, %v3324
        %v3326 = vlaneseq
        %v3327 = vshrl.u32 %v3326, 7
        %v3328 = vsub.s32 %v1370, %v3327
        %v3329 = vrot.slane %v2855, %v3328
        %v3330 = vsel %vm1375, %v3329, %v3325
        %v3331 = vlaneseq
        %v3332 = vshrl.u32 %v3331, 7
        %v3333 = vsub.s32 %v3099, %v3332
        %v3334 = vrot.slane %v2858, %v3333
        %v3335 = vsel %vm3104, %v3334, %v3330
        %v3336 = vlaneseq
        %v3337 = vshrl.u32 %v3336, 7
        %v3338 = vsub.s32 %v3106, %v3337
        %v3339 = vrot.slane %v2861, %v3338
        %v3340 = vsel %vm3111, %v3339, %v3335
        %v3341 = vlaneseq
        %v3342 = vshrl.u32 %v3341, 7
        %v3343 = vsub.s32 %v1365, %v3342
        %v3344 = vrot.slane %v2864, %v3343
        %v3345 = vlaneseq
        %v3346 = vshrl.u32 %v3345, 7
        %v3347 = vsub.s32 %v1370, %v3346
        %v3348 = vrot.slane %v2867, %v3347
        %v3349 = vsel %vm1375, %v3348, %v3344
        %v3350 = vlaneseq
        %v3351 = vshrl.u32 %v3350, 7
        %v3352 = vsub.s32 %v3099, %v3351
        %v3353 = vrot.slane %v2870, %v3352
        %v3354 = vsel %vm3104, %v3353, %v3349
        %v3355 = vlaneseq
        %v3356 = vshrl.u32 %v3355, 7
        %v3357 = vsub.s32 %v3106, %v3356
        %v3358 = vrot.slane %v2873, %v3357
        %v3359 = vsel %vm3111, %v3358, %v3354
        %v3360 = vlaneseq
        %v3361 = vshrl.u32 %v3360, 7
        %v3362 = vsub.s32 %v1365, %v3361
        %v3363 = vrot.slane %v2876, %v3362
        %v3364 = vlaneseq
        %v3365 = vshrl.u32 %v3364, 7
        %v3366 = vsub.s32 %v1370, %v3365
        %v3367 = vrot.slane %v2879, %v3366
        %v3368 = vsel %vm1375, %v3367, %v3363
        %v3369 = vlaneseq
        %v3370 = vshrl.u32 %v3369, 7
        %v3371 = vsub.s32 %v3099, %v3370
        %v3372 = vrot.slane %v2882, %v3371
        %v3373 = vsel %vm3104, %v3372, %v3368
        %v3374 = vlaneseq
        %v3375 = vshrl.u32 %v3374, 7
        %v3376 = vsub.s32 %v3106, %v3375
        %v3377 = vrot.slane %v2885, %v3376
        %v3378 = vsel %vm3111, %v3377, %v3373
        %v3379 = vlaneseq
        %v3380 = vshrl.u32 %v3379, 7
        %v3381 = vsub.s32 %v1365, %v3380
        %v3382 = vrot.slane %v2888, %v3381
        %v3383 = vlaneseq
        %v3384 = vshrl.u32 %v3383, 7
        %v3385 = vsub.s32 %v1370, %v3384
        %v3386 = vrot.slane %v2891, %v3385
        %v3387 = vsel %vm1375, %v3386, %v3382
        %v3388 = vlaneseq
        %v3389 = vshrl.u32 %v3388, 7
        %v3390 = vsub.s32 %v3099, %v3389
        %v3391 = vrot.slane %v2894, %v3390
        %v3392 = vsel %vm3104, %v3391, %v3387
        %v3393 = vlaneseq
        %v3394 = vshrl.u32 %v3393, 7
        %v3395 = vsub.s32 %v3106, %v3394
        %v3396 = vrot.slane %v2897, %v3395
        %v3397 = vsel %vm3111, %v3396, %v3392
        %v3398 = vlaneseq
        %v3399 = vshrl.u32 %v3398, 7
        %v3400 = vsub.s32 %v1365, %v3399
        %v3401 = vrot.slane %v2900, %v3400
        %v3402 = vlaneseq
        %v3403 = vshrl.u32 %v3402, 7
        %v3404 = vsub.s32 %v1370, %v3403
        %v3405 = vrot.slane %v2903, %v3404
        %v3406 = vsel %vm1375, %v3405, %v3401
        %v3407 = vlaneseq
        %v3408 = vshrl.u32 %v3407, 7
        %v3409 = vsub.s32 %v3099, %v3408
        %v3410 = vrot.slane %v2906, %v3409
        %v3411 = vsel %vm3104, %v3410, %v3406
        %v3412 = vlaneseq
        %v3413 = vshrl.u32 %v3412, 7
        %v3414 = vsub.s32 %v3106, %v3413
        %v3415 = vrot.slane %v2909, %v3414
        %v3416 = vsel %vm3111, %v3415, %v3411
        %v3417 = vlaneseq
        %v3418 = vshrl.u32 %v3417, 7
        %v3419 = vsub.s32 %v1365, %v3418
        %v3420 = vrot.slane %v2912, %v3419
        %v3421 = vlaneseq
        %v3422 = vshrl.u32 %v3421, 7
        %v3423 = vsub.s32 %v1370, %v3422
        %v3424 = vrot.slane %v2915, %v3423
        %v3425 = vsel %vm1375, %v3424, %v3420
        %v3426 = vlaneseq
        %v3427 = vshrl.u32 %v3426, 7
        %v3428 = vsub.s32 %v3099, %v3427
        %v3429 = vrot.slane %v2918, %v3428
        %v3430 = vsel %vm3104, %v3429, %v3425
        %v3431 = vlaneseq
        %v3432 = vshrl.u32 %v3431, 7
        %v3433 = vsub.s32 %v3106, %v3432
        %v3434 = vrot.slane %v2921, %v3433
        %v3435 = vsel %vm3111, %v3434, %v3430
        %v3436 = vlaneseq
        %v3437 = vshrl.u32 %v3436, 7
        %v3438 = vsub.s32 %v1365, %v3437
        %v3439 = vrot.slane %v2924, %v3438
        %v3440 = vlaneseq
        %v3441 = vshrl.u32 %v3440, 7
        %v3442 = vsub.s32 %v1370, %v3441
        %v3443 = vrot.slane %v2927, %v3442
        %v3444 = vsel %vm1375, %v3443, %v3439
        %v3445 = vlaneseq
        %v3446 = vshrl.u32 %v3445, 7
        %v3447 = vsub.s32 %v3099, %v3446
        %v3448 = vrot.slane %v2930, %v3447
        %v3449 = vsel %vm3104, %v3448, %v3444
        %v3450 = vlaneseq
        %v3451 = vshrl.u32 %v3450, 7
        %v3452 = vsub.s32 %v3106, %v3451
        %v3453 = vrot.slane %v2933, %v3452
        %v3454 = vsel %vm3111, %v3453, %v3449
        %v3455 = vlaneseq
        %v3456 = vshrl.u32 %v3455, 7
        %v3457 = vsub.s32 %v1365, %v3456
        %v3458 = vrot.slane %v2936, %v3457
        %v3459 = vlaneseq
        %v3460 = vshrl.u32 %v3459, 7
        %v3461 = vsub.s32 %v1370, %v3460
        %v3462 = vrot.slane %v2939, %v3461
        %v3463 = vsel %vm1375, %v3462, %v3458
        %v3464 = vlaneseq
        %v3465 = vshrl.u32 %v3464, 7
        %v3466 = vsub.s32 %v3099, %v3465
        %v3467 = vrot.slane %v2942, %v3466
        %v3468 = vsel %vm3104, %v3467, %v3463
        %v3469 = vlaneseq
        %v3470 = vshrl.u32 %v3469, 7
        %v3471 = vsub.s32 %v3106, %v3470
        %v3472 = vrot.slane %v2945, %v3471
        %v3473 = vsel %vm3111, %v3472, %v3468
        %v3474 = vlaneseq
        %v3475 = vshrl.u32 %v3474, 7
        %v3476 = vsub.s32 %v1365, %v3475
        %v3477 = vrot.slane %v2948, %v3476
        %v3478 = vlaneseq
        %v3479 = vshrl.u32 %v3478, 7
        %v3480 = vsub.s32 %v1370, %v3479
        %v3481 = vrot.slane %v2951, %v3480
        %v3482 = vsel %vm1375, %v3481, %v3477
        %v3483 = vlaneseq
        %v3484 = vshrl.u32 %v3483, 7
        %v3485 = vsub.s32 %v3099, %v3484
        %v3486 = vrot.slane %v2954, %v3485
        %v3487 = vsel %vm3104, %v3486, %v3482
        %v3488 = vlaneseq
        %v3489 = vshrl.u32 %v3488, 7
        %v3490 = vsub.s32 %v3106, %v3489
        %v3491 = vrot.slane %v2957, %v3490
        %v3492 = vsel %vm3111, %v3491, %v3487
        %v3493 = vlaneseq
        %v3494 = vshrl.u32 %v3493, 7
        %v3495 = vsub.s32 %v1365, %v3494
        %v3496 = vrot.slane %v2960, %v3495
        %v3497 = vlaneseq
        %v3498 = vshrl.u32 %v3497, 7
        %v3499 = vsub.s32 %v1370, %v3498
        %v3500 = vrot.slane %v2963, %v3499
        %v3501 = vsel %vm1375, %v3500, %v3496
        %v3502 = vlaneseq
        %v3503 = vshrl.u32 %v3502, 7
        %v3504 = vsub.s32 %v3099, %v3503
        %v3505 = vrot.slane %v2966, %v3504
        %v3506 = vsel %vm3104, %v3505, %v3501
        %v3507 = vlaneseq
        %v3508 = vshrl.u32 %v3507, 7
        %v3509 = vsub.s32 %v3106, %v3508
        %v3510 = vrot.slane %v2969, %v3509
        %v3511 = vsel %vm3111, %v3510, %v3506
        %v3512 = vlaneseq
        %v3513 = vshrl.u32 %v3512, 7
        %v3514 = vsub.s32 %v1365, %v3513
        %v3515 = vrot.slane %v2972, %v3514
        %v3516 = vlaneseq
        %v3517 = vshrl.u32 %v3516, 7
        %v3518 = vsub.s32 %v1370, %v3517
        %v3519 = vrot.slane %v2975, %v3518
        %v3520 = vsel %vm1375, %v3519, %v3515
        %v3521 = vlaneseq
        %v3522 = vshrl.u32 %v3521, 7
        %v3523 = vsub.s32 %v3099, %v3522
        %v3524 = vrot.slane %v2978, %v3523
        %v3525 = vsel %vm3104, %v3524, %v3520
        %v3526 = vlaneseq
        %v3527 = vshrl.u32 %v3526, 7
        %v3528 = vsub.s32 %v3106, %v3527
        %v3529 = vrot.slane %v2981, %v3528
        %v3530 = vsel %vm3111, %v3529, %v3525
        %v3531 = vlaneseq
        %v3532 = vshrl.u32 %v3531, 7
        %v3533 = vsub.s32 %v1365, %v3532
        %v3534 = vrot.slane %v2984, %v3533
        %v3535 = vlaneseq
        %v3536 = vshrl.u32 %v3535, 7
        %v3537 = vsub.s32 %v1370, %v3536
        %v3538 = vrot.slane %v2987, %v3537
        %v3539 = vsel %vm1375, %v3538, %v3534
        %v3540 = vlaneseq
        %v3541 = vshrl.u32 %v3540, 7
        %v3542 = vsub.s32 %v3099, %v3541
        %v3543 = vrot.slane %v2990, %v3542
        %v3544 = vsel %vm3104, %v3543, %v3539
        %v3545 = vlaneseq
        %v3546 = vshrl.u32 %v3545, 7
        %v3547 = vsub.s32 %v3106, %v3546
        %v3548 = vrot.slane %v2993, %v3547
        %v3549 = vsel %vm3111, %v3548, %v3544
        %v3550 = vlaneseq
        %v3551 = vshrl.u32 %v3550, 7
        %v3552 = vsub.s32 %v1365, %v3551
        %v3553 = vrot.slane %v2996, %v3552
        %v3554 = vlaneseq
        %v3555 = vshrl.u32 %v3554, 7
        %v3556 = vsub.s32 %v1370, %v3555
        %v3557 = vrot.slane %v2999, %v3556
        %v3558 = vsel %vm1375, %v3557, %v3553
        %v3559 = vlaneseq
        %v3560 = vshrl.u32 %v3559, 7
        %v3561 = vsub.s32 %v3099, %v3560
        %v3562 = vrot.slane %v3002, %v3561
        %v3563 = vsel %vm3104, %v3562, %v3558
        %v3564 = vlaneseq
        %v3565 = vshrl.u32 %v3564, 7
        %v3566 = vsub.s32 %v3106, %v3565
        %v3567 = vrot.slane %v3005, %v3566
        %v3568 = vsel %vm3111, %v3567, %v3563
        %v3569 = vlaneseq
        %v3570 = vshrl.u32 %v3569, 7
        %v3571 = vsub.s32 %v1365, %v3570
        %v3572 = vrot.slane %v3008, %v3571
        %v3573 = vlaneseq
        %v3574 = vshrl.u32 %v3573, 7
        %v3575 = vsub.s32 %v1370, %v3574
        %v3576 = vrot.slane %v3011, %v3575
        %v3577 = vsel %vm1375, %v3576, %v3572
        %v3578 = vlaneseq
        %v3579 = vshrl.u32 %v3578, 7
        %v3580 = vsub.s32 %v3099, %v3579
        %v3581 = vrot.slane %v3014, %v3580
        %v3582 = vsel %vm3104, %v3581, %v3577
        %v3583 = vlaneseq
        %v3584 = vshrl.u32 %v3583, 7
        %v3585 = vsub.s32 %v3106, %v3584
        %v3586 = vrot.slane %v3017, %v3585
        %v3587 = vsel %vm3111, %v3586, %v3582
        %v3588 = vlaneseq
        %v3589 = vshrl.u32 %v3588, 7
        %v3590 = vsub.s32 %v1365, %v3589
        %v3591 = vrot.slane %v3020, %v3590
        %v3592 = vlaneseq
        %v3593 = vshrl.u32 %v3592, 7
        %v3594 = vsub.s32 %v1370, %v3593
        %v3595 = vrot.slane %v3023, %v3594
        %v3596 = vsel %vm1375, %v3595, %v3591
        %v3597 = vlaneseq
        %v3598 = vshrl.u32 %v3597, 7
        %v3599 = vsub.s32 %v3099, %v3598
        %v3600 = vrot.slane %v3026, %v3599
        %v3601 = vsel %vm3104, %v3600, %v3596
        %v3602 = vlaneseq
        %v3603 = vshrl.u32 %v3602, 7
        %v3604 = vsub.s32 %v3106, %v3603
        %v3605 = vrot.slane %v3029, %v3604
        %v3606 = vsel %vm3111, %v3605, %v3601
        %v3607 = vlaneseq
        %v3608 = vshrl.u32 %v3607, 7
        %v3609 = vsub.s32 %v1365, %v3608
        %v3610 = vrot.slane %v3032, %v3609
        %v3611 = vlaneseq
        %v3612 = vshrl.u32 %v3611, 7
        %v3613 = vsub.s32 %v1370, %v3612
        %v3614 = vrot.slane %v3035, %v3613
        %v3615 = vsel %vm1375, %v3614, %v3610
        %v3616 = vlaneseq
        %v3617 = vshrl.u32 %v3616, 7
        %v3618 = vsub.s32 %v3099, %v3617
        %v3619 = vrot.slane %v3038, %v3618
        %v3620 = vsel %vm3104, %v3619, %v3615
        %v3621 = vlaneseq
        %v3622 = vshrl.u32 %v3621, 7
        %v3623 = vsub.s32 %v3106, %v3622
        %v3624 = vrot.slane %v3041, %v3623
        %v3625 = vsel %vm3111, %v3624, %v3620
        %v3626 = vlaneseq
        %v3627 = vshrl.u32 %v3626, 7
        %v3628 = vsub.s32 %v1365, %v3627
        %v3629 = vrot.slane %v3044, %v3628
        %v3630 = vlaneseq
        %v3631 = vshrl.u32 %v3630, 7
        %v3632 = vsub.s32 %v1370, %v3631
        %v3633 = vrot.slane %v3047, %v3632
        %v3634 = vsel %vm1375, %v3633, %v3629
        %v3635 = vlaneseq
        %v3636 = vshrl.u32 %v3635, 7
        %v3637 = vsub.s32 %v3099, %v3636
        %v3638 = vrot.slane %v3050, %v3637
        %v3639 = vsel %vm3104, %v3638, %v3634
        %v3640 = vlaneseq
        %v3641 = vshrl.u32 %v3640, 7
        %v3642 = vsub.s32 %v3106, %v3641
        %v3643 = vrot.slane %v3053, %v3642
        %v3644 = vsel %vm3111, %v3643, %v3639
        %v3645 = vlaneseq
        %v3646 = vshrl.u32 %v3645, 7
        %v3647 = vsub.s32 %v1365, %v3646
        %v3648 = vrot.slane %v3056, %v3647
        %v3649 = vlaneseq
        %v3650 = vshrl.u32 %v3649, 7
        %v3651 = vsub.s32 %v1370, %v3650
        %v3652 = vrot.slane %v3059, %v3651
        %v3653 = vsel %vm1375, %v3652, %v3648
        %v3654 = vlaneseq
        %v3655 = vshrl.u32 %v3654, 7
        %v3656 = vsub.s32 %v3099, %v3655
        %v3657 = vrot.slane %v3062, %v3656
        %v3658 = vsel %vm3104, %v3657, %v3653
        %v3659 = vlaneseq
        %v3660 = vshrl.u32 %v3659, 7
        %v3661 = vsub.s32 %v3106, %v3660
        %v3662 = vrot.slane %v3065, %v3661
        %v3663 = vsel %vm3111, %v3662, %v3658
        %v3664 = vlaneseq
        %v3665 = vshrl.u32 %v3664, 7
        %v3666 = vsub.s32 %v1365, %v3665
        %v3667 = vrot.slane %v3068, %v3666
        %v3668 = vlaneseq
        %v3669 = vshrl.u32 %v3668, 7
        %v3670 = vsub.s32 %v1370, %v3669
        %v3671 = vrot.slane %v3071, %v3670
        %v3672 = vsel %vm1375, %v3671, %v3667
        %v3673 = vlaneseq
        %v3674 = vshrl.u32 %v3673, 7
        %v3675 = vsub.s32 %v3099, %v3674
        %v3676 = vrot.slane %v3074, %v3675
        %v3677 = vsel %vm3104, %v3676, %v3672
        %v3678 = vlaneseq
        %v3679 = vshrl.u32 %v3678, 7
        %v3680 = vsub.s32 %v3106, %v3679
        %v3681 = vrot.slane %v3077, %v3680
        %v3682 = vsel %vm3111, %v3681, %v3677
        %v3683 = vlaneseq
        %v3684 = vshrl.u32 %v3683, 7
        %v3685 = vsub.s32 %v1365, %v3684
        %v3686 = vrot.slane %v3080, %v3685
        %v3687 = vlaneseq
        %v3688 = vshrl.u32 %v3687, 7
        %v3689 = vsub.s32 %v1370, %v3688
        %v3690 = vrot.slane %v3083, %v3689
        %v3691 = vsel %vm1375, %v3690, %v3686
        %v3692 = vlaneseq
        %v3693 = vshrl.u32 %v3692, 7
        %v3694 = vsub.s32 %v3099, %v3693
        %v3695 = vrot.slane %v3086, %v3694
        %v3696 = vsel %vm3104, %v3695, %v3691
        %v3697 = vlaneseq
        %v3698 = vshrl.u32 %v3697, 7
        %v3699 = vsub.s32 %v3106, %v3698
        %v3700 = vrot.slane %v3089, %v3699
        %v3701 = vsel %vm3111, %v3700, %v3696
        %v3702 = vsel %vm1944, %v3131, %v3112
        %v3703 = vsel %vm1946, %v3150, %v3702
        %v3704 = vsel %vm1948, %v3169, %v3703
        %v3705 = vsel %vm1950, %v3188, %v3704
        %v3706 = vsel %vm1952, %v3207, %v3705
        %v3707 = vsel %vm1954, %v3226, %v3706
        %v3708 = vsel %vm1956, %v3245, %v3707
        %v3709 = vsel %vm1944, %v3283, %v3264
        %v3710 = vsel %vm1946, %v3302, %v3709
        %v3711 = vsel %vm1948, %v3321, %v3710
        %v3712 = vsel %vm1950, %v3340, %v3711
        %v3713 = vsel %vm1952, %v3359, %v3712
        %v3714 = vsel %vm1954, %v3378, %v3713
        %v3715 = vsel %vm1956, %v3397, %v3714
        %v3716 = vsel %vm1944, %v3435, %v3416
        %v3717 = vsel %vm1946, %v3454, %v3716
        %v3718 = vsel %vm1948, %v3473, %v3717
        %v3719 = vsel %vm1950, %v3492, %v3718
        %v3720 = vsel %vm1952, %v3511, %v3719
        %v3721 = vsel %vm1954, %v3530, %v3720
        %v3722 = vsel %vm1956, %v3549, %v3721
        %v3723 = vsel %vm1944, %v3587, %v3568
        %v3724 = vsel %vm1946, %v3606, %v3723
        %v3725 = vsel %vm1948, %v3625, %v3724
        %v3726 = vsel %vm1950, %v3644, %v3725
        %v3727 = vsel %vm1952, %v3663, %v3726
        %v3728 = vsel %vm1954, %v3682, %v3727
        %v3729 = vsel %vm1956, %v3701, %v3728
        %vm3734 = vcmask 261120
        %v3735 = vsel %vm3734, %v3708, 0.0
        %3736 = vadd.xlane.f32.xlu0 %v3735
        %v3737 = vpop.xlane.xlu0 %3736
        %v3738 = vsel %vm3734, %v3715, 0.0
        %3739 = vadd.xlane.f32.xlu0 %v3738
        %v3740 = vpop.xlane.xlu0 %3739
        %v3741 = vsel %vm3734, %v3722, 0.0
        %3742 = vadd.xlane.f32.xlu0 %v3741
        %v3743 = vpop.xlane.xlu0 %3742
        %v3744 = vsel %vm3734, %v3729, 0.0
        %3745 = vadd.xlane.f32.xlu0 %v3744
        %v3746 = vpop.xlane.xlu0 %3745
        %v3748 = vlaneseq
        %v3749 = vshrl.u32 %v3748, 7
        %v3750 = vsub.s32 0, %v3749
        %v3751 = vrot.slane %v303, %v3750
        %3753 = vbcast.lane.b32.xlu0 %v3751, 256
        %v3754 = vpop.permute.xlu0 %3753
        %s3756 = sor.u32 256, 8
        %3757 = vbcast.lane.b32.xlu0 %v3751, %s3756
        %v3758 = vpop.permute.xlu0 %3757
        %v3761 = vadd.f32 %v3737, %v3754
        %v3762 = vadd.f32 %v3740, %v3758
        %v3763 = vadd.f32 %v3743, %v3754
        %v3764 = vadd.f32 %v3746, %v3758
        %v3765 = vmul.f32 %v3761, 0.16666667
        %v3766 = vmul.f32 %v3762, 0.16666667
        %v3767 = vmul.f32 %v3763, 0.16666667
        %v3768 = vmul.f32 %v3764, 0.16666667
        %v3769 = vadd.f32 %v3765, 0.5
        %v3770 = vadd.f32 %v3766, 0.5
        %v3771 = vadd.f32 %v3767, 0.5
        %v3772 = vadd.f32 %v3768, 0.5
        %v3773 = vmax.f32 %v3769, 0.0
        %v3774 = vmax.f32 %v3770, 0.0
        %v3775 = vmax.f32 %v3771, 0.0
        %v3776 = vmax.f32 %v3772, 0.0
        %v3777 = vmin.f32 %v3773, 1.0
        %v3778 = vmin.f32 %v3774, 1.0
        %v3779 = vmin.f32 %v3775, 1.0
        %v3780 = vmin.f32 %v3776, 1.0
        %3782 = vset.pattern.permute.xlu0 0
        %3783 = vperm.xlu0 %3782, %v3777
        %v3784 = vpop.permute.xlu0 %3783
        %3787 = vset.pattern.permute.xlu0 0
        %3788 = vperm.xlu0 %3787, %v3778
        %v3789 = vpop.permute.xlu0 %3788
        %3792 = vset.pattern.permute.xlu0 0
        %3793 = vperm.xlu0 %3792, %v3779
        %v3794 = vpop.permute.xlu0 %3793
        %3797 = vset.pattern.permute.xlu0 0
        %3798 = vperm.xlu0 %3797, %v3780
        %v3799 = vpop.permute.xlu0 %3798
        %v3801 = vmul.f32 %v267, %v3784
        %v3802 = vmul.f32 %v268, %v3784
        %v3803 = vmul.f32 %v269, %v3789
        %v3804 = vmul.f32 %v270, %v3789
        %v3805 = vmul.f32 %v271, %v3794
        %v3806 = vmul.f32 %v272, %v3794
        %v3807 = vmul.f32 %v273, %v3799
        %v3808 = vmul.f32 %v274, %v3799
        %3809 = vst [vmem:[%s252] sm:$0xff] %v3801
        %3810 = vst.msk [vmem:[%s252 + $0x8] sm:$0xff] %vm275, %v3802
        %3811 = vst [vmem:[%s252 + $0x10] sm:$0xff] %v3803
        %3812 = vst.msk [vmem:[%s252 + $0x18] sm:$0xff] %vm275, %v3804
        %3813 = vst [vmem:[%s252 + $0x20] sm:$0xff] %v3805
        %3814 = vst.msk [vmem:[%s252 + $0x28] sm:$0xff] %vm275, %v3806
        %3815 = vst [vmem:[%s252 + $0x30] sm:$0xff] %v3807
        %3816 = vst.msk [vmem:[%s252 + $0x38] sm:$0xff] %vm275, %v3808
        %s3817 = sand.u32 %s140, 1
        %s3818 = scalar_lea.sflag [#allocation4], %s3817
        %s3819 = sand.u32 %s140, 1
        %s3820 = smul.addr %s3819, 64
        %s3821 = scalar_lea.vmem [#allocation5], %s3820
        // Predicated region
        $region45: #{tpu_custom_call.1} parent=39 // pred_check
          %p3822 = pneg %p150
        $region46: #{tpu_custom_call.1} parent=39 // pred_check_branch
          %3824 = sbr.rel (%p3822) target = $region48
        $region47: #{tpu_custom_call.1} parent=39 // pred_region
          %s3825 = smul.u32 2, %s22
          %s3826 = ssub.s32 3, %s3825
          %p3827 = scmp.lt.s32.totalorder %s3826, 2
          %s3828 = scalar_select %p3827, %s3826, 2
          %s3829 = smul.u32 128, %s3828
          %s3830 = smul.u32 %s3829, 2
          %s3831 = smul.u32 %s3830, 2
          %s3833 = ssub.s32 1024, %s3831
          %3834 = vsyncadd %s3818, %s3833
          %p3835 = scmp.ne.s32.totalorder 0, %s3831
          %s3836 = smul.addr %s3825, 4
          %s3837 = smul.addr %s3836, 128
          %s3838 = scalar_lea.hbm %s5, %s3837
          %s3839 = smul.u32 %s3828, 2
          %s3840 = smul.u32 16, %s3839
          %s3841 = sshll.u32 %s3821, 4
          %s3842 = int_to_ptr.vmem [resolvable:$true] %s3841
          %s3843 = sshll.u32 %s3840, 4
          %3847 = dma.vmem_to_hbm [thread:$0]  (%p3835), %s3842, %s3843, %s3838, %s3818, 256, 256, 16
        $region48: #{tpu_custom_call.1} parent=39 // pred_fallthru
          _
      $region40: #{tpu_custom_call.1} parent=5 // pred_fallthru
        _
      %p3848 = scmp.le.s32.totalorder 2, %s17
      // Predicated region
      $region49: #{tpu_custom_call.1} parent=5 // pred_check
        %p3849 = pneg %p3848
      $region50: #{tpu_custom_call.1} parent=5 // pred_check_branch
        %3851 = sbr.rel (%p3849) target = $region52
      $region51: #{tpu_custom_call.1} parent=5 // pred_region
        %s3852 = ssub.s32 %s17, 2
        // Predicated region
        $region53: #{tpu_custom_call.1} parent=51 // pred_check
          %p3853 = pneg %p156
        $region54: #{tpu_custom_call.1} parent=51 // pred_check_branch
          %3855 = sbr.rel (%p3853) target = $region56
        $region55: #{tpu_custom_call.1} parent=51 // pred_region
          %s3856 = sand.u32 %s141, 1
          %s3857 = scalar_lea.sflag [#allocation4], %s3856
          %s3858 = sand.u32 %s141, 1
          %s3859 = smul.addr %s3858, 64
          %s3860 = scalar_lea.vmem [#allocation5], %s3859
          %3861 = dma.done %s3857, 1024
        $region56: #{tpu_custom_call.1} parent=51 // pred_fallthru
          _
      $region52: #{tpu_custom_call.1} parent=5 // pred_fallthru
        _
    $region6: #{tpu_custom_call.1} parent=1 // loop_footer
      %s21 = sadd.s32 1, %s17
    $region7: #{tpu_custom_call.1} parent=1 // loop_footer_branch
      %16 = sbr.rel target = $region3
    $region8: #{tpu_custom_call.1} parent=1 // loop_exit
      _
    %3862 = vsyncpa [#allocation3], 1
    %s3863 = scalar_lea.sflag [#allocation3], 1
    %3864 = vsyncpa %s3863, 1
    %3865 = vsyncpa [#allocation4], 1
    %s3866 = scalar_lea.sflag [#allocation4], 1
    %3867 = vsyncpa %s3866, 1

</llo_original>
